<compile_context>
chip_gen: v7x
topology: tpu7x:2x2x1
jax: 0.10.0
libtpu: 0.0.40
codegen_flags: <defaults>
</compile_context>

<pallas_src>
import functools

import jax
import jax.numpy as jnp
from jax import lax
from jax.experimental import pallas as pl
from jax.experimental.pallas import tpu as pltpu


def _class_attention_kernel(x_ref, wq_ref, wkv_ref, wproj_ref, bproj_ref,
                            seg_ref, segT_ref, o_ref, *, approx_recip):
    TB, N, C = x_ref.shape
    H = seg_ref.shape[1]

    x = x_ref[...]                                   # (TB, N, C)  bf16
    x2d = x.reshape(TB * N, C)                       # layout-free when N % 8 == 0
    x_cls = x[:, 0, :]                               # (TB, C)  class tokens

    # ---- projections: one stacked q-GEMM + one fused (TB*N, 2C) k/v GEMM ----
    # MXU, bf16 operands, fp32 accumulation; the qk scale is pre-folded into wq.
    q = jnp.dot(x_cls, wq_ref[...], preferred_element_type=jnp.float32)      # (TB, C)
    kv = jnp.dot(x2d, wkv_ref[...], preferred_element_type=jnp.float32)      # (TB*N, 2C)
    kv = kv.reshape(TB, N, 2 * C)
    k = kv[:, :, :C]                                                         # (TB, N, C)
    v = kv[:, :, C:]                                                         # (TB, N, C)

    seg = seg_ref[...]                               # (C, H) 0/1 channel->head, bf16
    segT = segT_ref[...]                             # (H, C) 0/1, bf16

    # ---- per-head scores: s[b,n,h] = sum_{c in head h} q[b,c] * k[b,n,c] ----
    qk = (q[:, None, :] * k).astype(jnp.bfloat16)                            # (TB, N, C)
    s = jnp.dot(qk.reshape(TB * N, C), seg,
                preferred_element_type=jnp.float32).reshape(TB, N, H)

    # k/v exclude the class token (torch uses x[:, 1:]); mask row 0 instead of
    # doing an (8,128)-tile-crossing sublane slice.
    tok = lax.broadcasted_iota(jnp.int32, (TB, N, H), 1)
    s = jnp.where(tok == 0, -1e30, s)

    # ---- softmax over tokens; normalisation deferred to the (TB, C) stage ----
    p = jnp.exp(s - jnp.max(s, axis=1, keepdims=True))                       # (TB, N, H)
    l = jnp.sum(p, axis=1)                                                   # (TB, H)

    # broadcast each head's weights over that head's lanes, reduce over tokens
    p_lanes = jnp.dot(p.reshape(TB * N, H).astype(jnp.bfloat16), segT,
                      preferred_element_type=jnp.float32).reshape(TB, N, C)
    acc = jnp.sum(p_lanes * v, axis=1)                                       # (TB, C) unnormalised

    inv_l = pl.reciprocal(l, approx=True) if approx_recip else 1.0 / l       # (TB, H)
    inv_lanes = jnp.dot(inv_l, segT.astype(jnp.float32),
                        preferred_element_type=jnp.float32)                  # (TB, C) tiny fp32 GEMM

    # ---- output projection + bias ----
    y = jnp.dot((acc * inv_lanes).astype(jnp.bfloat16), wproj_ref[...],
                preferred_element_type=jnp.float32) + bproj_ref[...]         # (TB, C)
    o_ref[:, 0, :] = y.astype(o_ref.dtype)


def prepare_class_attention_params(params, num_heads):
    """One-time parameter preparation (outside the hot path).

    Folds the qk scale into wq, fuses wk/wv into one (C, 2C) matrix, casts the
    MXU operands to bf16 and builds the 0/1 channel->head segment matrices.
    Weights are stored as (in, out) == torch_weight.T.
    """
    C = params["wq"].shape[0]
    assert C % num_heads == 0
    hd = C // num_heads
    scale = hd ** -0.5                               # qk_scale=None -> head_dim**-0.5
    seg = (jnp.arange(C)[:, None] // hd == jnp.arange(num_heads)[None, :])
    return {
        "wq": (params["wq"] * scale).astype(jnp.bfloat16),                   # (C, C), scale folded
        "wkv": jnp.concatenate([params["wk"], params["wv"]],
                               axis=1).astype(jnp.bfloat16),                 # (C, 2C)
        "wproj": params["w_proj"].astype(jnp.bfloat16),                      # (C, C)
        "bproj": params["b_proj"].reshape(1, C).astype(jnp.float32),         # (1, C)
        "seg": seg.astype(jnp.bfloat16),                                     # (C, H)
        "segT": seg.T.astype(jnp.bfloat16),                                  # (H, C)
    }


def _pick_block_b(B, N, C, H):
    """Batch tile size: biggest TB (<=16) whose working set fits a conservative
    ~24 MiB VMEM budget (sized against v7x's 64 MiB physical / 32 MiB scoped
    default), while keeping >=2 grid blocks so both v7x TensorCores get work."""
    budget = 24 * 1024 * 1024
    weight_bytes = 2 * (4 * C * C) * 2 + 2 * (2 * C * H * 2 + C * 4)   # double-buffered worst case
    per_batch = (2 * N * C * 2            # x tile, bf16, double-buffered
                 + N * 2 * C * 4          # fp32 kv intermediate
                 + 4 * N * C * 4          # qk / p_lanes / weighted-v fp32 temporaries
                 + 4 * C * 4)             # q / acc / out rows
    avail = budget - weight_bytes
    tb = max(1, min(16, B, avail // per_batch if avail > 0 else 1))
    if B >= 2:
        tb = min(tb, (B + 1) // 2)        # keep >= 2 grid blocks (v7x megacore)
    return int(tb)


def class_attention_pallas(x, prepared, num_heads, *, block_b=None, approx_recip=True):
    """ClassAttention.forward: x (B, N, C) -> x_cls (B, 1, C) (fp32 output)."""
    B, N, C = x.shape
    H = num_heads
    assert N >= 2, "need the class token plus at least one token"
    assert C % H == 0
    TB = int(block_b) if block_b is not None else _pick_block_b(B, N, C, H)

    # Stream activations in bf16: with VMEM-resident weights, x is the dominant
    # HBM traffic.  Ideally the producer already emits bf16 (cast is a no-op).
    x = x.astype(jnp.bfloat16)

    kernel = functools.partial(_class_attention_kernel, approx_recip=approx_recip)

    def build_and_call(weight_pipeline_mode):
        kw = {} if weight_pipeline_mode is None else {"pipeline_mode": weight_pipeline_mode}

        def resident(shape):
            rank = len(shape)
            return pl.BlockSpec(shape, lambda b, _r=rank: (0,) * _r, **kw)

        return pl.pallas_call(
            kernel,
            out_shape=jax.ShapeDtypeStruct((B, 1, C), jnp.float32),
            grid=(pl.cdiv(B, TB),),
            in_specs=[
                pl.BlockSpec((TB, N, C), lambda b: (b, 0, 0)),   # x (TB batch elems / step)
                resident((C, C)),                                # wq    (VMEM resident)
                resident((C, 2 * C)),                            # w_kv  (VMEM resident)
                resident((C, C)),                                # wproj (VMEM resident)
                resident((1, C)),                                # proj bias
                resident((C, H)),                                # seg  (channel -> head)
                resident((H, C)),                                # segT (head -> channel)
            ],
            out_specs=pl.BlockSpec((TB, 1, C), lambda b: (b, 0, 0)),
            compiler_params=pltpu.CompilerParams(
                dimension_semantics=("parallel",),               # shard blocks over TCs
                vmem_limit_bytes=64 * 1024 * 1024),
        )(x, prepared["wq"], prepared["wkv"], prepared["wproj"],
          prepared["bproj"], prepared["seg"], prepared["segT"])

    try:
        # Constant-index weights never change between grid steps: single-buffer
        # them to halve their VMEM footprint (matters on v7x's 64 MiB VMEM).
        return build_and_call(pl.Buffered(1))
    except Exception:
        # Fallback for JAX versions without pipeline_mode / buffer_count=1.
        return build_and_call(None)


def class_attention_reference(x, wq, wk, wv, w_proj, b_proj, num_heads, scale):
    """Pure fp32 JAX mirror of the PyTorch module (weights given as (in, out))."""
    B, N, C = x.shape
    hd = C // num_heads
    x_cls, x_tok = x[:, 0], x[:, 1:]
    q = (x_cls @ wq).reshape(B, 1, num_heads, hd).transpose(0, 2, 1, 3) * scale
    k = (x_tok @ wk).reshape(B, N - 1, num_heads, hd).transpose(0, 2, 1, 3)
    v = (x_tok @ wv).reshape(B, N - 1, num_heads, hd).transpose(0, 2, 1, 3)
    attn = jax.nn.softmax(q @ jnp.swapaxes(k, -2, -1), axis=-1)
    out = (attn @ v).transpose(0, 2, 1, 3).reshape(B, 1, C)
    return out @ w_proj + b_proj


if __name__ == "__main__":
    # Small demo shapes (C=32 is not a multiple of 128, so lane occupancy is low
    # here; production C should be a multiple of 128 for dense vst / clean kv split).
    B, N, C, num_heads = 16, 8, 32, 4
    key = jax.random.PRNGKey(0)
    kx, kq, kk, kv, kp, kb = jax.random.split(key, 6)
    std = 0.2
    x = jax.random.normal(kx, (B, N, C), jnp.float32)
    params = {
        "wq": std * jax.random.normal(kq, (C, C), jnp.float32),
        "wk": std * jax.random.normal(kk, (C, C), jnp.float32),
        "wv": std * jax.random.normal(kv, (C, C), jnp.float32),
        "w_proj": std * jax.random.normal(kp, (C, C), jnp.float32),
        "b_proj": std * jax.random.normal(kb, (C,), jnp.float32),
    }

    prepared = prepare_class_attention_params(params, num_heads)   # one-time prep
    out = jax.block_until_ready(class_attention_pallas(x, prepared, num_heads))
    assert out.shape == (B, 1, C), out.shape
    assert bool(jnp.all(jnp.isfinite(out)))

    # bf16-matched reference: same bf16-rounded activations / weights as the
    # kernel, fp32 math.  Remaining error is only the in-kernel bf16 operand
    # casts (q*k, p, attn_out) and the approximate softmax reciprocal; the q*k
    # rounding feeds the softmax, so a few % of the O(1) outputs is the
    # expected worst case.
    xm = x.astype(jnp.bfloat16).astype(jnp.float32)
    wkv32 = prepared["wkv"].astype(jnp.float32)
    ref_matched = class_attention_reference(
        xm, prepared["wq"].astype(jnp.float32), wkv32[:, :C], wkv32[:, C:],
        prepared["wproj"].astype(jnp.float32), prepared["bproj"].astype(jnp.float32),
        num_heads, 1.0)                                  # scale already folded into wq
    ref_fp32 = class_attention_reference(
        x, params["wq"], params["wk"], params["wv"], params["w_proj"],
        params["b_proj"], num_heads, (C // num_heads) ** -0.5)

    err = jnp.abs(out - ref_matched)
    max_err, mean_err = float(jnp.max(err)), float(jnp.mean(err))
    err_fp32 = float(jnp.max(jnp.abs(out - ref_fp32)))
    assert max_err < 7e-2 and mean_err < 2e-2, (max_err, mean_err)
    assert err_fp32 < 2e-1, err_fp32       # sanity vs the pure-fp32 torch-equivalent math
    print("KERNEL_OK")
</pallas_src>

<mosaic_0001>
module attributes {stable_mosaic.version = 11 : i64} {
  func.func @_class_attention_kernel(%arg0: i32, %arg1: memref<8x8x32xbf16, #tpu.memory_space<vmem>>, %arg2: memref<32x32xbf16, #tpu.memory_space<vmem>>, %arg3: memref<32x64xbf16, #tpu.memory_space<vmem>>, %arg4: memref<32x32xbf16, #tpu.memory_space<vmem>>, %arg5: memref<1x32xf32, #tpu.memory_space<vmem>>, %arg6: memref<32x4xbf16, #tpu.memory_space<vmem>>, %arg7: memref<4x32xbf16, #tpu.memory_space<vmem>>, %arg8: memref<8x1x32xf32, #tpu.memory_space<vmem>>) attributes {dimension_semantics = [#tpu.dimension_semantics<parallel>], iteration_bounds = array<i64: 2>, scalar_prefetch = 0 : i64, scratch_operands = 0 : i64, tpu.core_type = #tpu.core_type<tc>, window_params = [{transform_indices = @transform_0, window_bounds = array<i64: 8, 8, 32>}, {pipeline_mode = #tpu.pipeline_mode<synchronous>, transform_indices = @transform_1, window_bounds = array<i64: 32, 32>}, {pipeline_mode = #tpu.pipeline_mode<synchronous>, transform_indices = @transform_2, window_bounds = array<i64: 32, 64>}, {pipeline_mode = #tpu.pipeline_mode<synchronous>, transform_indices = @transform_3, window_bounds = array<i64: 32, 32>}, {pipeline_mode = #tpu.pipeline_mode<synchronous>, transform_indices = @transform_4, window_bounds = array<i64: 1, 32>}, {pipeline_mode = #tpu.pipeline_mode<synchronous>, transform_indices = @transform_5, window_bounds = array<i64: 32, 4>}, {pipeline_mode = #tpu.pipeline_mode<synchronous>, transform_indices = @transform_6, window_bounds = array<i64: 4, 32>}, {transform_indices = @transform_7, window_bounds = array<i64: 8, 1, 32>}]} {
    %c0 = arith.constant 0 : index
    %c0_0 = arith.constant 0 : index
    %c0_1 = arith.constant 0 : index
    %0 = vector.load %arg1[%c0, %c0_0, %c0_1] : memref<8x8x32xbf16, #tpu.memory_space<vmem>>, vector<8x8x32xbf16>
    %1 = vector.shape_cast %0 : vector<8x8x32xbf16> to vector<64x32xbf16>
    %2 = vector.extract_strided_slice %0 {offsets = [0, 0, 0], sizes = [8, 1, 32], strides = [1, 1, 1]} : vector<8x8x32xbf16> to vector<8x1x32xbf16>
    %3 = vector.shape_cast %2 : vector<8x1x32xbf16> to vector<8x32xbf16>
    %c0_2 = arith.constant 0 : index
    %c0_3 = arith.constant 0 : index
    %4 = vector.load %arg2[%c0_2, %c0_3] : memref<32x32xbf16, #tpu.memory_space<vmem>>, vector<32x32xbf16>
    %cst = arith.constant dense<0.000000e+00> : vector<8x32xf32>
    %5 = tpu.matmul %3, %4, %cst {dimension_numbers = #tpu.dot_dimension_numbers<[1], [0], [0], [1], [0, 0, 1, 1], [], []>} : vector<8x32xbf16>, vector<32x32xbf16>, vector<8x32xf32> -> vector<8x32xf32>
    %c0_4 = arith.constant 0 : index
    %c0_5 = arith.constant 0 : index
    %6 = vector.load %arg3[%c0_4, %c0_5] : memref<32x64xbf16, #tpu.memory_space<vmem>>, vector<32x64xbf16>
    %cst_6 = arith.constant dense<0.000000e+00> : vector<64x64xf32>
    %7 = tpu.matmul %1, %6, %cst_6 {dimension_numbers = #tpu.dot_dimension_numbers<[1], [0], [0], [1], [0, 0, 1, 1], [], []>} : vector<64x32xbf16>, vector<32x64xbf16>, vector<64x64xf32> -> vector<64x64xf32>
    %8 = vector.shape_cast %7 : vector<64x64xf32> to vector<8x8x64xf32>
    %9 = vector.extract_strided_slice %8 {offsets = [0, 0, 0], sizes = [8, 8, 32], strides = [1, 1, 1]} : vector<8x8x64xf32> to vector<8x8x32xf32>
    %10 = vector.extract_strided_slice %8 {offsets = [0, 0, 32], sizes = [8, 8, 32], strides = [1, 1, 1]} : vector<8x8x64xf32> to vector<8x8x32xf32>
    %c0_7 = arith.constant 0 : index
    %c0_8 = arith.constant 0 : index
    %11 = vector.load %arg6[%c0_7, %c0_8] : memref<32x4xbf16, #tpu.memory_space<vmem>>, vector<32x4xbf16>
    %c0_9 = arith.constant 0 : index
    %c0_10 = arith.constant 0 : index
    %12 = vector.load %arg7[%c0_9, %c0_10] : memref<4x32xbf16, #tpu.memory_space<vmem>>, vector<4x32xbf16>
    %13 = vector.shape_cast %5 : vector<8x32xf32> to vector<8x1x32xf32>
    %14 = vector.broadcast %13 : vector<8x1x32xf32> to vector<8x8x32xf32>
    %15 = arith.mulf %14, %9 : vector<8x8x32xf32>
    %16 = arith.truncf %15 : vector<8x8x32xf32> to vector<8x8x32xbf16>
    %17 = vector.shape_cast %16 : vector<8x8x32xbf16> to vector<64x32xbf16>
    %cst_11 = arith.constant dense<0.000000e+00> : vector<64x4xf32>
    %18 = tpu.matmul %17, %11, %cst_11 {dimension_numbers = #tpu.dot_dimension_numbers<[1], [0], [0], [1], [0, 0, 1, 1], [], []>} : vector<64x32xbf16>, vector<32x4xbf16>, vector<64x4xf32> -> vector<64x4xf32>
    %19 = vector.shape_cast %18 : vector<64x4xf32> to vector<8x8x4xf32>
    %20 = tpu.iota {dimensions = array<i32: 1>} : vector<8x8x4xi32>
    %c0_i32 = arith.constant 0 : i32
    %21 = vector.broadcast %c0_i32 : i32 to vector<8x8x4xi32>
    %22 = arith.cmpi eq, %20, %21 : vector<8x8x4xi32>
    %cst_12 = arith.constant -1.000000e+30 : f32
    %23 = vector.broadcast %cst_12 : f32 to vector<8x8x4xf32>
    %24 = arith.select %22, %23, %19 : vector<8x8x4xi1>, vector<8x8x4xf32>
    %cst_13 = arith.constant dense<0xFF800000> : vector<8x4xf32>
    %25 = vector.multi_reduction <maximumf>, %24, %cst_13 [1] : vector<8x8x4xf32> to vector<8x4xf32>
    %26 = vector.shape_cast %25 : vector<8x4xf32> to vector<8x1x4xf32>
    %27 = vector.broadcast %26 : vector<8x1x4xf32> to vector<8x8x4xf32>
    %28 = arith.subf %24, %27 : vector<8x8x4xf32>
    %29 = math.exp %28 : vector<8x8x4xf32>
    %cst_14 = arith.constant dense<0.000000e+00> : vector<8x4xf32>
    %30 = vector.multi_reduction <add>, %29, %cst_14 [1] : vector<8x8x4xf32> to vector<8x4xf32>
    %31 = vector.shape_cast %29 : vector<8x8x4xf32> to vector<64x4xf32>
    %32 = arith.truncf %31 : vector<64x4xf32> to vector<64x4xbf16>
    %cst_15 = arith.constant dense<0.000000e+00> : vector<64x32xf32>
    %33 = tpu.matmul %32, %12, %cst_15 {dimension_numbers = #tpu.dot_dimension_numbers<[1], [0], [0], [1], [0, 0, 1, 1], [], []>} : vector<64x4xbf16>, vector<4x32xbf16>, vector<64x32xf32> -> vector<64x32xf32>
    %34 = vector.shape_cast %33 : vector<64x32xf32> to vector<8x8x32xf32>
    %35 = arith.mulf %34, %10 : vector<8x8x32xf32>
    %cst_16 = arith.constant dense<0.000000e+00> : vector<8x32xf32>
    %36 = vector.multi_reduction <add>, %35, %cst_16 [1] : vector<8x8x32xf32> to vector<8x32xf32>
    %37 = tpu.reciprocal %30 {approx = true} : vector<8x4xf32> -> vector<8x4xf32>
    %38 = arith.extf %12 : vector<4x32xbf16> to vector<4x32xf32>
    %cst_17 = arith.constant dense<0.000000e+00> : vector<8x32xf32>
    %39 = tpu.matmul %37, %38, %cst_17 {dimension_numbers = #tpu.dot_dimension_numbers<[1], [0], [0], [1], [0, 0, 1, 1], [], []>} : vector<8x4xf32>, vector<4x32xf32>, vector<8x32xf32> -> vector<8x32xf32>
    %40 = arith.mulf %36, %39 : vector<8x32xf32>
    %41 = arith.truncf %40 : vector<8x32xf32> to vector<8x32xbf16>
    %c0_18 = arith.constant 0 : index
    %c0_19 = arith.constant 0 : index
    %42 = vector.load %arg4[%c0_18, %c0_19] : memref<32x32xbf16, #tpu.memory_space<vmem>>, vector<32x32xbf16>
    %cst_20 = arith.constant dense<0.000000e+00> : vector<8x32xf32>
    %43 = tpu.matmul %41, %42, %cst_20 {dimension_numbers = #tpu.dot_dimension_numbers<[1], [0], [0], [1], [0, 0, 1, 1], [], []>} : vector<8x32xbf16>, vector<32x32xbf16>, vector<8x32xf32> -> vector<8x32xf32>
    %c0_21 = arith.constant 0 : index
    %c0_22 = arith.constant 0 : index
    %44 = vector.load %arg5[%c0_21, %c0_22] : memref<1x32xf32, #tpu.memory_space<vmem>>, vector<1x32xf32>
    %45 = vector.broadcast %44 : vector<1x32xf32> to vector<8x32xf32>
    %46 = arith.addf %43, %45 : vector<8x32xf32>
    %c0_23 = arith.constant 0 : index
    %c0_24 = arith.constant 0 : index
    %c0_25 = arith.constant 0 : index
    %47 = vector.load %arg8[%c0_23, %c0_24, %c0_25] : memref<8x1x32xf32, #tpu.memory_space<vmem>>, vector<8x1x32xf32>
    %48 = vector.shape_cast %47 : vector<8x1x32xf32> to vector<8x32xf32>
    %49 = vector.shape_cast %46 : vector<8x32xf32> to vector<8x1x32xf32>
    tpu.vector_store %arg8[%c0_23, %c0_24, %c0_25], %49 {strides = array<i32>} : memref<8x1x32xf32, #tpu.memory_space<vmem>>, vector<8x1x32xf32>,
    return
  }
  func.func @transform_0(%arg0: i32) -> (i32, i32, i32) {
    %c0_i32 = arith.constant 0 : i32
    %c0_i32_0 = arith.constant 0 : i32
    %c0_i32_1 = arith.constant 0 : i32
    return %arg0, %c0_i32, %c0_i32_0 : i32, i32, i32
  }
  func.func @transform_1(%arg0: i32) -> (i32, i32) {
    %c0_i32 = arith.constant 0 : i32
    %c0_i32_0 = arith.constant 0 : i32
    %c0_i32_1 = arith.constant 0 : i32
    return %c0_i32, %c0_i32_0 : i32, i32
  }
  func.func @transform_2(%arg0: i32) -> (i32, i32) {
    %c0_i32 = arith.constant 0 : i32
    %c0_i32_0 = arith.constant 0 : i32
    %c0_i32_1 = arith.constant 0 : i32
    return %c0_i32, %c0_i32_0 : i32, i32
  }
  func.func @transform_3(%arg0: i32) -> (i32, i32) {
    %c0_i32 = arith.constant 0 : i32
    %c0_i32_0 = arith.constant 0 : i32
    %c0_i32_1 = arith.constant 0 : i32
    return %c0_i32, %c0_i32_0 : i32, i32
  }
  func.func @transform_4(%arg0: i32) -> (i32, i32) {
    %c0_i32 = arith.constant 0 : i32
    %c0_i32_0 = arith.constant 0 : i32
    %c0_i32_1 = arith.constant 0 : i32
    return %c0_i32, %c0_i32_0 : i32, i32
  }
  func.func @transform_5(%arg0: i32) -> (i32, i32) {
    %c0_i32 = arith.constant 0 : i32
    %c0_i32_0 = arith.constant 0 : i32
    %c0_i32_1 = arith.constant 0 : i32
    return %c0_i32, %c0_i32_0 : i32, i32
  }
  func.func @transform_6(%arg0: i32) -> (i32, i32) {
    %c0_i32 = arith.constant 0 : i32
    %c0_i32_0 = arith.constant 0 : i32
    %c0_i32_1 = arith.constant 0 : i32
    return %c0_i32, %c0_i32_0 : i32, i32
  }
  func.func @transform_7(%arg0: i32) -> (i32, i32, i32) {
    %c0_i32 = arith.constant 0 : i32
    %c0_i32_0 = arith.constant 0 : i32
    %c0_i32_1 = arith.constant 0 : i32
    return %arg0, %c0_i32, %c0_i32_0 : i32, i32, i32
  }
}

module attributes {stable_mosaic.version = 11 : i64} {
  func.func @_class_attention_kernel(%arg0: i32, %arg1: memref<8x8x32xbf16, #tpu.memory_space<vmem>>, %arg2: memref<32x32xbf16, #tpu.memory_space<vmem>>, %arg3: memref<32x64xbf16, #tpu.memory_space<vmem>>, %arg4: memref<32x32xbf16, #tpu.memory_space<vmem>>, %arg5: memref<1x32xf32, #tpu.memory_space<vmem>>, %arg6: memref<32x4xbf16, #tpu.memory_space<vmem>>, %arg7: memref<4x32xbf16, #tpu.memory_space<vmem>>, %arg8: memref<8x1x32xf32, #tpu.memory_space<vmem>>) attributes {dimension_semantics = [#tpu.dimension_semantics<parallel>], iteration_bounds = array<i64: 2>, scalar_prefetch = 0 : i64, scratch_operands = 0 : i64, tpu.core_type = #tpu.core_type<tc>, window_params = [{transform_indices = @transform_0, window_bounds = array<i64: 8, 8, 32>}, {pipeline_mode = #tpu.pipeline_mode<synchronous>, transform_indices = @transform_1, window_bounds = array<i64: 32, 32>}, {pipeline_mode = #tpu.pipeline_mode<synchronous>, transform_indices = @transform_2, window_bounds = array<i64: 32, 64>}, {pipeline_mode = #tpu.pipeline_mode<synchronous>, transform_indices = @transform_3, window_bounds = array<i64: 32, 32>}, {pipeline_mode = #tpu.pipeline_mode<synchronous>, transform_indices = @transform_4, window_bounds = array<i64: 1, 32>}, {pipeline_mode = #tpu.pipeline_mode<synchronous>, transform_indices = @transform_5, window_bounds = array<i64: 32, 4>}, {pipeline_mode = #tpu.pipeline_mode<synchronous>, transform_indices = @transform_6, window_bounds = array<i64: 4, 32>}, {transform_indices = @transform_7, window_bounds = array<i64: 8, 1, 32>}]} {
    %c0 = arith.constant 0 : index
    %c0_0 = arith.constant 0 : index
    %c0_1 = arith.constant 0 : index
    %0 = vector.load %arg1[%c0, %c0_0, %c0_1] : memref<8x8x32xbf16, #tpu.memory_space<vmem>>, vector<8x8x32xbf16>
    %1 = vector.shape_cast %0 : vector<8x8x32xbf16> to vector<64x32xbf16>
    %2 = vector.extract_strided_slice %0 {offsets = [0, 0, 0], sizes = [8, 1, 32], strides = [1, 1, 1]} : vector<8x8x32xbf16> to vector<8x1x32xbf16>
    %3 = vector.shape_cast %2 : vector<8x1x32xbf16> to vector<8x32xbf16>
    %c0_2 = arith.constant 0 : index
    %c0_3 = arith.constant 0 : index
    %4 = vector.load %arg2[%c0_2, %c0_3] : memref<32x32xbf16, #tpu.memory_space<vmem>>, vector<32x32xbf16>
    %cst = arith.constant dense<0.000000e+00> : vector<8x32xf32>
    %5 = tpu.matmul %3, %4, %cst {dimension_numbers = #tpu.dot_dimension_numbers<[1], [0], [0], [1], [0, 0, 1, 1], [], []>} : vector<8x32xbf16>, vector<32x32xbf16>, vector<8x32xf32> -> vector<8x32xf32>
    %c0_4 = arith.constant 0 : index
    %c0_5 = arith.constant 0 : index
    %6 = vector.load %arg3[%c0_4, %c0_5] : memref<32x64xbf16, #tpu.memory_space<vmem>>, vector<32x64xbf16>
    %cst_6 = arith.constant dense<0.000000e+00> : vector<64x64xf32>
    %7 = tpu.matmul %1, %6, %cst_6 {dimension_numbers = #tpu.dot_dimension_numbers<[1], [0], [0], [1], [0, 0, 1, 1], [], []>} : vector<64x32xbf16>, vector<32x64xbf16>, vector<64x64xf32> -> vector<64x64xf32>
    %8 = vector.shape_cast %7 : vector<64x64xf32> to vector<8x8x64xf32>
    %9 = vector.extract_strided_slice %8 {offsets = [0, 0, 0], sizes = [8, 8, 32], strides = [1, 1, 1]} : vector<8x8x64xf32> to vector<8x8x32xf32>
    %10 = vector.extract_strided_slice %8 {offsets = [0, 0, 32], sizes = [8, 8, 32], strides = [1, 1, 1]} : vector<8x8x64xf32> to vector<8x8x32xf32>
    %c0_7 = arith.constant 0 : index
    %c0_8 = arith.constant 0 : index
    %11 = vector.load %arg6[%c0_7, %c0_8] : memref<32x4xbf16, #tpu.memory_space<vmem>>, vector<32x4xbf16>
    %c0_9 = arith.constant 0 : index
    %c0_10 = arith.constant 0 : index
    %12 = vector.load %arg7[%c0_9, %c0_10] : memref<4x32xbf16, #tpu.memory_space<vmem>>, vector<4x32xbf16>
    %13 = vector.shape_cast %5 : vector<8x32xf32> to vector<8x1x32xf32>
    %14 = vector.broadcast %13 : vector<8x1x32xf32> to vector<8x8x32xf32>
    %15 = arith.mulf %14, %9 : vector<8x8x32xf32>
    %16 = arith.truncf %15 : vector<8x8x32xf32> to vector<8x8x32xbf16>
    %17 = vector.shape_cast %16 : vector<8x8x32xbf16> to vector<64x32xbf16>
    %cst_11 = arith.constant dense<0.000000e+00> : vector<64x4xf32>
    %18 = tpu.matmul %17, %11, %cst_11 {dimension_numbers = #tpu.dot_dimension_numbers<[1], [0], [0], [1], [0, 0, 1, 1], [], []>} : vector<64x32xbf16>, vector<32x4xbf16>, vector<64x4xf32> -> vector<64x4xf32>
    %19 = vector.shape_cast %18 : vector<64x4xf32> to vector<8x8x4xf32>
    %20 = tpu.iota {dimensions = array<i32: 1>} : vector<8x8x4xi32>
    %c0_i32 = arith.constant 0 : i32
    %21 = vector.broadcast %c0_i32 : i32 to vector<8x8x4xi32>
    %22 = arith.cmpi eq, %20, %21 : vector<8x8x4xi32>
    %cst_12 = arith.constant -1.000000e+30 : f32
    %23 = vector.broadcast %cst_12 : f32 to vector<8x8x4xf32>
    %24 = arith.select %22, %23, %19 : vector<8x8x4xi1>, vector<8x8x4xf32>
    %cst_13 = arith.constant dense<0xFF800000> : vector<8x4xf32>
    %25 = vector.multi_reduction <maximumf>, %24, %cst_13 [1] : vector<8x8x4xf32> to vector<8x4xf32>
    %26 = vector.shape_cast %25 : vector<8x4xf32> to vector<8x1x4xf32>
    %27 = vector.broadcast %26 : vector<8x1x4xf32> to vector<8x8x4xf32>
    %28 = arith.subf %24, %27 : vector<8x8x4xf32>
    %29 = math.exp %28 : vector<8x8x4xf32>
    %cst_14 = arith.constant dense<0.000000e+00> : vector<8x4xf32>
    %30 = vector.multi_reduction <add>, %29, %cst_14 [1] : vector<8x8x4xf32> to vector<8x4xf32>
    %31 = vector.shape_cast %29 : vector<8x8x4xf32> to vector<64x4xf32>
    %32 = arith.truncf %31 : vector<64x4xf32> to vector<64x4xbf16>
    %cst_15 = arith.constant dense<0.000000e+00> : vector<64x32xf32>
    %33 = tpu.matmul %32, %12, %cst_15 {dimension_numbers = #tpu.dot_dimension_numbers<[1], [0], [0], [1], [0, 0, 1, 1], [], []>} : vector<64x4xbf16>, vector<4x32xbf16>, vector<64x32xf32> -> vector<64x32xf32>
    %34 = vector.shape_cast %33 : vector<64x32xf32> to vector<8x8x32xf32>
    %35 = arith.mulf %34, %10 : vector<8x8x32xf32>
    %cst_16 = arith.constant dense<0.000000e+00> : vector<8x32xf32>
    %36 = vector.multi_reduction <add>, %35, %cst_16 [1] : vector<8x8x32xf32> to vector<8x32xf32>
    %37 = tpu.reciprocal %30 {approx = true} : vector<8x4xf32> -> vector<8x4xf32>
    %38 = arith.extf %12 : vector<4x32xbf16> to vector<4x32xf32>
    %cst_17 = arith.constant dense<0.000000e+00> : vector<8x32xf32>
    %39 = tpu.matmul %37, %38, %cst_17 {dimension_numbers = #tpu.dot_dimension_numbers<[1], [0], [0], [1], [0, 0, 1, 1], [], []>} : vector<8x4xf32>, vector<4x32xf32>, vector<8x32xf32> -> vector<8x32xf32>
    %40 = arith.mulf %36, %39 : vector<8x32xf32>
    %41 = arith.truncf %40 : vector<8x32xf32> to vector<8x32xbf16>
    %c0_18 = arith.constant 0 : index
    %c0_19 = arith.constant 0 : index
    %42 = vector.load %arg4[%c0_18, %c0_19] : memref<32x32xbf16, #tpu.memory_space<vmem>>, vector<32x32xbf16>
    %cst_20 = arith.constant dense<0.000000e+00> : vector<8x32xf32>
    %43 = tpu.matmul %41, %42, %cst_20 {dimension_numbers = #tpu.dot_dimension_numbers<[1], [0], [0], [1], [0, 0, 1, 1], [], []>} : vector<8x32xbf16>, vector<32x32xbf16>, vector<8x32xf32> -> vector<8x32xf32>
    %c0_21 = arith.constant 0 : index
    %c0_22 = arith.constant 0 : index
    %44 = vector.load %arg5[%c0_21, %c0_22] : memref<1x32xf32, #tpu.memory_space<vmem>>, vector<1x32xf32>
    %45 = vector.broadcast %44 : vector<1x32xf32> to vector<8x32xf32>
    %46 = arith.addf %43, %45 : vector<8x32xf32>
    %c0_23 = arith.constant 0 : index
    %c0_24 = arith.constant 0 : index
    %c0_25 = arith.constant 0 : index
    %47 = vector.load %arg8[%c0_23, %c0_24, %c0_25] : memref<8x1x32xf32, #tpu.memory_space<vmem>>, vector<8x1x32xf32>
    %48 = vector.shape_cast %47 : vector<8x1x32xf32> to vector<8x32xf32>
    %49 = vector.shape_cast %46 : vector<8x32xf32> to vector<8x1x32xf32>
    tpu.vector_store %arg8[%c0_23, %c0_24, %c0_25], %49 {strides = array<i32>} : memref<8x1x32xf32, #tpu.memory_space<vmem>>, vector<8x1x32xf32>,
    return
  }
  func.func @transform_0(%arg0: i32) -> (i32, i32, i32) {
    %c0_i32 = arith.constant 0 : i32
    %c0_i32_0 = arith.constant 0 : i32
    %c0_i32_1 = arith.constant 0 : i32
    return %arg0, %c0_i32, %c0_i32_0 : i32, i32, i32
  }
  func.func @transform_1(%arg0: i32) -> (i32, i32) {
    %c0_i32 = arith.constant 0 : i32
    %c0_i32_0 = arith.constant 0 : i32
    %c0_i32_1 = arith.constant 0 : i32
    return %c0_i32, %c0_i32_0 : i32, i32
  }
  func.func @transform_2(%arg0: i32) -> (i32, i32) {
    %c0_i32 = arith.constant 0 : i32
    %c0_i32_0 = arith.constant 0 : i32
    %c0_i32_1 = arith.constant 0 : i32
    return %c0_i32, %c0_i32_0 : i32, i32
  }
  func.func @transform_3(%arg0: i32) -> (i32, i32) {
    %c0_i32 = arith.constant 0 : i32
    %c0_i32_0 = arith.constant 0 : i32
    %c0_i32_1 = arith.constant 0 : i32
    return %c0_i32, %c0_i32_0 : i32, i32
  }
  func.func @transform_4(%arg0: i32) -> (i32, i32) {
    %c0_i32 = arith.constant 0 : i32
    %c0_i32_0 = arith.constant 0 : i32
    %c0_i32_1 = arith.constant 0 : i32
    return %c0_i32, %c0_i32_0 : i32, i32
  }
  func.func @transform_5(%arg0: i32) -> (i32, i32) {
    %c0_i32 = arith.constant 0 : i32
    %c0_i32_0 = arith.constant 0 : i32
    %c0_i32_1 = arith.constant 0 : i32
    return %c0_i32, %c0_i32_0 : i32, i32
  }
  func.func @transform_6(%arg0: i32) -> (i32, i32) {
    %c0_i32 = arith.constant 0 : i32
    %c0_i32_0 = arith.constant 0 : i32
    %c0_i32_1 = arith.constant 0 : i32
    return %c0_i32, %c0_i32_0 : i32, i32
  }
  func.func @transform_7(%arg0: i32) -> (i32, i32, i32) {
    %c0_i32 = arith.constant 0 : i32
    %c0_i32_0 = arith.constant 0 : i32
    %c0_i32_1 = arith.constant 0 : i32
    return %arg0, %c0_i32, %c0_i32_0 : i32, i32, i32
  }
}

</mosaic_0001>

<llo_original>
// kernel: tpu_custom_call.1
$region0: #{tpu_custom_call.1}
  #allocation0 [shape = 'u32[]', space=smem, size = 0x4, offset = 0x4, fixed_abs, tag = 'smem constant byte address 0x4 - core index']
  #allocation1 [shape = 'u32[144,128]{1,0:T(1,128)}', space=vmem, size = 0x12000, scoped, tag = 'internal scratch']
  %s0 = inlined_call_operand.hbm [shape: bf16[16,8,32], index: 0, kind: input, shape index: {}]
  %s1 = inlined_call_operand.hbm [shape: bf16[32,32], index: 1, kind: input, shape index: {}]
  %s2 = inlined_call_operand.hbm [shape: bf16[32,64], index: 2, kind: input, shape index: {}]
  %s3 = inlined_call_operand.hbm [shape: bf16[32,32], index: 3, kind: input, shape index: {}]
  %s4 = inlined_call_operand.hbm [shape: f32[1,32], index: 4, kind: input, shape index: {}]
  %s5 = inlined_call_operand.hbm [shape: bf16[32,4], index: 5, kind: input, shape index: {}]
  %s6 = inlined_call_operand.hbm [shape: bf16[4,32], index: 6, kind: input, shape index: {}]
  %s7 = inlined_call_operand.hbm [shape: f32[16,1,32], index: 7, kind: output, shape index: {}]
  %s8 = sld [smem:[#allocation0]]
  $region89: #{tpu_custom_call.1} parent=0
    _
  %s10 = ssub.s32 1, %s8
  %s11 = scalar_select 0, %s10, %s8
  $region1: #{tpu_custom_call.1} parent=0
    #allocation2 [shape = 'u8[32768]{0}', space=vmem, size = 0x8000, scoped, tag = 'input window, operand 0']
    #allocation3 [shape = 's32[2]{0}', space=sflag, size = 0x8, scoped, tag = 'scoped memory for tpu_custom_call.1']
    #allocation4 [shape = 's32[2]{0}', space=sflag, size = 0x8, scoped, tag = 'scoped memory for tpu_custom_call.1']
    #allocation5 [shape = 'u8[8192]{0}', space=vmem, size = 0x2000, scoped, tag = 'input window, operand 1, single buffered']
    #allocation6 [shape = 's32[1]{0}', space=sflag, size = 0x4, scoped, tag = 'scoped memory for tpu_custom_call.1']
    #allocation7 [shape = 'u8[8192]{0}', space=vmem, size = 0x2000, scoped, tag = 'input window, operand 2, single buffered']
    #allocation8 [shape = 'u8[8192]{0}', space=vmem, size = 0x2000, scoped, tag = 'input window, operand 3, single buffered']
    #allocation9 [shape = 's32[1]{0}', space=sflag, size = 0x4, scoped, tag = 'scoped memory for tpu_custom_call.1']
    #allocation10 [shape = 'u8[512]{0}', space=vmem, size = 0x400, scoped, tag = 'input window, operand 4, single buffered']
    #allocation11 [shape = 'u8[8192]{0}', space=vmem, size = 0x2000, scoped, tag = 'input window, operand 5, single buffered']
    #allocation12 [shape = 's32[1]{0}', space=sflag, size = 0x4, scoped, tag = 'scoped memory for tpu_custom_call.1']
    #allocation13 [shape = 'u8[1024]{0}', space=vmem, size = 0x400, scoped, tag = 'input window, operand 6, single buffered']
    #allocation14 [shape = 'u8[8192]{0}', space=vmem, size = 0x2000, scoped, tag = 'output window, operand 0']
    %12 = vsyncpa [#allocation3], 0
    %s13 = scalar_lea.sflag [#allocation3], 1
    %14 = vsyncpa %s13, 0
    %15 = vsyncpa [#allocation6], 0
    %16 = vsyncpa [#allocation9], 0
    %17 = vsyncpa [#allocation12], 0
    %18 = vsyncpa [#allocation4], 0
    %s19 = scalar_lea.sflag [#allocation4], 1
    %20 = vsyncpa %s19, 0
    loop: start=0, step=1, limit=4
    $region2: #{tpu_custom_call.1} parent=1 // loop_pre_header
      _
    $region3: #{tpu_custom_call.1} parent=1 // loop_header
      %s22 = sphi 0, %s26
      %p23 = scmp.ge.s32.totalorder %s22, 4
      %s32 = sphi 0, %s34
      %s35 = sphi 0, %s32
      %s36 = sphi 0, %s35
      %s52 = sphi 0, %s36
      %s56 = sphi 0, %s56
      %s58 = sphi 0, %s56
      %s59 = sphi 0, %s58
      %s73 = sphi 0, %s59
      %s77 = sphi 0, %s77
      %s79 = sphi 0, %s77
      %s80 = sphi 0, %s79
      %s94 = sphi 0, %s80
      %s98 = sphi 0, %s98
      %s100 = sphi 0, %s98
      %s101 = sphi 0, %s100
      %s115 = sphi 0, %s101
      %s119 = sphi 0, %s119
      %s121 = sphi 0, %s119
      %s122 = sphi 0, %s121
      %s136 = sphi 0, %s122
      %s140 = sphi 0, %s140
      %s142 = sphi 0, %s140
      %s143 = sphi 0, %s142
      %s157 = sphi 0, %s143
      %s161 = sphi 0, %s161
      %s163 = sphi 0, %s161
      %s164 = sphi 0, %s163
      %s178 = sphi 0, %s164
      %s184 = sphi 0, %s186
      %s187 = sphi 0, %s184
      %s188 = sphi 0, %s187
      %s204 = sphi 0, %s188
    $region4: #{tpu_custom_call.1} parent=1 // loop_header_branch
      %25 = sbr.rel (%p23) target = $region8
    $region5: #{tpu_custom_call.1} parent=1 // loop_body
      %s27 = ssub.s32 %s22, 1
      %s28 = ssub.s32 %s22, 2
      %s29 = sadd.s32 %s22, 1
      %s30 = ssub.s32 %s22, %s29
      %p31 = scmp.eq.s32.totalorder %s30, 0
      %s33 = sadd.s32 %s32, 1
      %s34 = scalar_select %p31, %s32, %s33
      %p37 = pneg %p31
      %p38 = scmp.eq.s32.totalorder %s22, 1
      %p39 = por %p37, %p38
      %p40 = scmp.ne.s32.totalorder %s32, %s35
      %p41 = scmp.eq.s32.totalorder %s22, 0
      %p42 = por %p40, %p41
      %p43 = scmp.ne.s32.totalorder %s32, %s35
      %p44 = scmp.eq.s32.totalorder %s27, 1
      %p45 = por %p43, %p44
      %p46 = scmp.ne.s32.totalorder %s35, %s36
      %p47 = scmp.eq.s32.totalorder %s27, 0
      %p48 = por %p46, %p47
      %p49 = scmp.ne.s32.totalorder %s35, %s36
      %p50 = scmp.eq.s32.totalorder %s28, 1
      %p51 = por %p49, %p50
      %p53 = scmp.ne.s32.totalorder %s36, %s52
      %p54 = scmp.eq.s32.totalorder %s28, 0
      %p55 = por %p53, %p54
      %s57 = sadd.s32 %s56, 1
      %p60 = scmp.eq.s32.totalorder %s22, 1
      %p61 = scmp.ne.s32.totalorder %s56, %s58
      %p62 = scmp.eq.s32.totalorder %s22, 0
      %p63 = por %p61, %p62
      %p64 = scmp.ne.s32.totalorder %s56, %s58
      %p65 = scmp.eq.s32.totalorder %s27, 1
      %p66 = por %p64, %p65
      %p67 = scmp.ne.s32.totalorder %s58, %s59
      %p68 = scmp.eq.s32.totalorder %s27, 0
      %p69 = por %p67, %p68
      %p70 = scmp.ne.s32.totalorder %s58, %s59
      %p71 = scmp.eq.s32.totalorder %s28, 1
      %p72 = por %p70, %p71
      %p74 = scmp.ne.s32.totalorder %s59, %s73
      %p75 = scmp.eq.s32.totalorder %s28, 0
      %p76 = por %p74, %p75
      %s78 = sadd.s32 %s77, 1
      %p81 = scmp.eq.s32.totalorder %s22, 1
      %p82 = scmp.ne.s32.totalorder %s77, %s79
      %p83 = scmp.eq.s32.totalorder %s22, 0
      %p84 = por %p82, %p83
      %p85 = scmp.ne.s32.totalorder %s77, %s79
      %p86 = scmp.eq.s32.totalorder %s27, 1
      %p87 = por %p85, %p86
      %p88 = scmp.ne.s32.totalorder %s79, %s80
      %p89 = scmp.eq.s32.totalorder %s27, 0
      %p90 = por %p88, %p89
      %p91 = scmp.ne.s32.totalorder %s79, %s80
      %p92 = scmp.eq.s32.totalorder %s28, 1
      %p93 = por %p91, %p92
      %p95 = scmp.ne.s32.totalorder %s80, %s94
      %p96 = scmp.eq.s32.totalorder %s28, 0
      %p97 = por %p95, %p96
      %s99 = sadd.s32 %s98, 1
      %p102 = scmp.eq.s32.totalorder %s22, 1
      %p103 = scmp.ne.s32.totalorder %s98, %s100
      %p104 = scmp.eq.s32.totalorder %s22, 0
      %p105 = por %p103, %p104
      %p106 = scmp.ne.s32.totalorder %s98, %s100
      %p107 = scmp.eq.s32.totalorder %s27, 1
      %p108 = por %p106, %p107
      %p109 = scmp.ne.s32.totalorder %s100, %s101
      %p110 = scmp.eq.s32.totalorder %s27, 0
      %p111 = por %p109, %p110
      %p112 = scmp.ne.s32.totalorder %s100, %s101
      %p113 = scmp.eq.s32.totalorder %s28, 1
      %p114 = por %p112, %p113
      %p116 = scmp.ne.s32.totalorder %s101, %s115
      %p117 = scmp.eq.s32.totalorder %s28, 0
      %p118 = por %p116, %p117
      %s120 = sadd.s32 %s119, 1
      %p123 = scmp.eq.s32.totalorder %s22, 1
      %p124 = scmp.ne.s32.totalorder %s119, %s121
      %p125 = scmp.eq.s32.totalorder %s22, 0
      %p126 = por %p124, %p125
      %p127 = scmp.ne.s32.totalorder %s119, %s121
      %p128 = scmp.eq.s32.totalorder %s27, 1
      %p129 = por %p127, %p128
      %p130 = scmp.ne.s32.totalorder %s121, %s122
      %p131 = scmp.eq.s32.totalorder %s27, 0
      %p132 = por %p130, %p131
      %p133 = scmp.ne.s32.totalorder %s121, %s122
      %p134 = scmp.eq.s32.totalorder %s28, 1
      %p135 = por %p133, %p134
      %p137 = scmp.ne.s32.totalorder %s122, %s136
      %p138 = scmp.eq.s32.totalorder %s28, 0
      %p139 = por %p137, %p138
      %s141 = sadd.s32 %s140, 1
      %p144 = scmp.eq.s32.totalorder %s22, 1
      %p145 = scmp.ne.s32.totalorder %s140, %s142
      %p146 = scmp.eq.s32.totalorder %s22, 0
      %p147 = por %p145, %p146
      %p148 = scmp.ne.s32.totalorder %s140, %s142
      %p149 = scmp.eq.s32.totalorder %s27, 1
      %p150 = por %p148, %p149
      %p151 = scmp.ne.s32.totalorder %s142, %s143
      %p152 = scmp.eq.s32.totalorder %s27, 0
      %p153 = por %p151, %p152
      %p154 = scmp.ne.s32.totalorder %s142, %s143
      %p155 = scmp.eq.s32.totalorder %s28, 1
      %p156 = por %p154, %p155
      %p158 = scmp.ne.s32.totalorder %s143, %s157
      %p159 = scmp.eq.s32.totalorder %s28, 0
      %p160 = por %p158, %p159
      %s162 = sadd.s32 %s161, 1
      %p165 = scmp.eq.s32.totalorder %s22, 1
      %p166 = scmp.ne.s32.totalorder %s161, %s163
      %p167 = scmp.eq.s32.totalorder %s22, 0
      %p168 = por %p166, %p167
      %p169 = scmp.ne.s32.totalorder %s161, %s163
      %p170 = scmp.eq.s32.totalorder %s27, 1
      %p171 = por %p169, %p170
      %p172 = scmp.ne.s32.totalorder %s163, %s164
      %p173 = scmp.eq.s32.totalorder %s27, 0
      %p174 = por %p172, %p173
      %p175 = scmp.ne.s32.totalorder %s163, %s164
      %p176 = scmp.eq.s32.totalorder %s28, 1
      %p177 = por %p175, %p176
      %p179 = scmp.ne.s32.totalorder %s164, %s178
      %p180 = scmp.eq.s32.totalorder %s28, 0
      %p181 = por %p179, %p180
      %s182 = ssub.s32 %s22, %s29
      %p183 = scmp.eq.s32.totalorder %s182, 0
      %s185 = sadd.s32 %s184, 1
      %s186 = scalar_select %p183, %s184, %s185
      %p189 = pneg %p183
      %p190 = scmp.eq.s32.totalorder %s22, 1
      %p191 = por %p189, %p190
      %p192 = scmp.ne.s32.totalorder %s184, %s187
      %p193 = scmp.eq.s32.totalorder %s22, 0
      %p194 = por %p192, %p193
      %p195 = scmp.ne.s32.totalorder %s184, %s187
      %p196 = scmp.eq.s32.totalorder %s27, 1
      %p197 = por %p195, %p196
      %p198 = scmp.ne.s32.totalorder %s187, %s188
      %p199 = scmp.eq.s32.totalorder %s27, 0
      %p200 = por %p198, %p199
      %p201 = scmp.ne.s32.totalorder %s187, %s188
      %p202 = scmp.eq.s32.totalorder %s28, 1
      %p203 = por %p201, %p202
      %p205 = scmp.ne.s32.totalorder %s188, %s204
      %p206 = scmp.eq.s32.totalorder %s28, 0
      %p207 = por %p205, %p206
      %p208 = scmp.le.s32.totalorder 1, %s22
      %p209 = scmp.lt.s32.totalorder %s22, 3
      %p210 = pnand %p208, %p209
      %p211 = pneg %p210
      // Predicated region
      $region9: #{tpu_custom_call.1} parent=5 // pred_check
        _
      $region10: #{tpu_custom_call.1} parent=5 // pred_check_branch
        %213 = sbr.rel (%p210) target = $region12
      $region11: #{tpu_custom_call.1} parent=5 // pred_region
        %s214 = ssub.s32 %s22, 1
        // Predicated region
        $region13: #{tpu_custom_call.1} parent=11 // pred_check
          %p215 = pneg %p69
        $region14: #{tpu_custom_call.1} parent=11 // pred_check_branch
          %217 = sbr.rel (%p215) target = $region16
        $region15: #{tpu_custom_call.1} parent=11 // pred_region
          %s219 = ssub.s32 256, 256
          %220 = vsyncadd [#allocation6], %s219
          %s221 = sshll.u32 [#allocation5], 4
          %s222 = int_to_ptr.vmem [resolvable:$true] %s221
          %227 = dma.hbm_to_vmem [thread:$0]  %s1, 256, %s222, [#allocation6], 64, 64, 4
        $region16: #{tpu_custom_call.1} parent=11 // pred_fallthru
          _
        // Predicated region
        $region17: #{tpu_custom_call.1} parent=11 // pred_check
          %p228 = pneg %p90
        $region18: #{tpu_custom_call.1} parent=11 // pred_check_branch
          %230 = sbr.rel (%p228) target = $region20
        $region19: #{tpu_custom_call.1} parent=11 // pred_region
          %s232 = ssub.s32 256, 256
          %233 = vsyncadd [#allocation6], %s232
          %s234 = sshll.u32 [#allocation7], 4
          %s235 = int_to_ptr.vmem [resolvable:$true] %s234
          %240 = dma.hbm_to_vmem [thread:$0]  %s2, 256, %s235, [#allocation6], 64, 64, 4
        $region20: #{tpu_custom_call.1} parent=11 // pred_fallthru
          _
        // Predicated region
        $region21: #{tpu_custom_call.1} parent=11 // pred_check
          %p241 = pneg %p111
        $region22: #{tpu_custom_call.1} parent=11 // pred_check_branch
          %243 = sbr.rel (%p241) target = $region24
        $region23: #{tpu_custom_call.1} parent=11 // pred_region
          %s245 = ssub.s32 256, 256
          %246 = vsyncadd [#allocation9], %s245
          %s247 = sshll.u32 [#allocation8], 4
          %s248 = int_to_ptr.vmem [resolvable:$true] %s247
          %253 = dma.hbm_to_vmem [thread:$0]  %s3, 256, %s248, [#allocation9], 64, 64, 4
        $region24: #{tpu_custom_call.1} parent=11 // pred_fallthru
          _
        // Predicated region
        $region25: #{tpu_custom_call.1} parent=11 // pred_check
          %p254 = pneg %p132
        $region26: #{tpu_custom_call.1} parent=11 // pred_check_branch
          %256 = sbr.rel (%p254) target = $region28
        $region27: #{tpu_custom_call.1} parent=11 // pred_region
          %s258 = ssub.s32 16, 16
          %259 = vsyncadd [#allocation9], %s258
          %s261 = sshll.u32 [#allocation10], 4
          %s262 = int_to_ptr.vmem [resolvable:$true] %s261
          %264 = dma.hbm_to_vmem [thread:$0]  %s4, 16, %s262, [#allocation9]
        $region28: #{tpu_custom_call.1} parent=11 // pred_fallthru
          _
        // Predicated region
        $region29: #{tpu_custom_call.1} parent=11 // pred_check
          %p265 = pneg %p153
        $region30: #{tpu_custom_call.1} parent=11 // pred_check_branch
          %267 = sbr.rel (%p265) target = $region32
        $region31: #{tpu_custom_call.1} parent=11 // pred_region
          %s269 = ssub.s32 256, 256
          %270 = vsyncadd [#allocation12], %s269
          %s271 = sshll.u32 [#allocation11], 4
          %s272 = int_to_ptr.vmem [resolvable:$true] %s271
          %277 = dma.hbm_to_vmem [thread:$0]  %s5, 256, %s272, [#allocation12], 64, 64, 4
        $region32: #{tpu_custom_call.1} parent=11 // pred_fallthru
          _
        // Predicated region
        $region33: #{tpu_custom_call.1} parent=11 // pred_check
          %p278 = pneg %p174
        $region34: #{tpu_custom_call.1} parent=11 // pred_check_branch
          %280 = sbr.rel (%p278) target = $region36
        $region35: #{tpu_custom_call.1} parent=11 // pred_region
          %s282 = ssub.s32 32, 32
          %283 = vsyncadd [#allocation12], %s282
          %s285 = sshll.u32 [#allocation13], 4
          %s286 = int_to_ptr.vmem [resolvable:$true] %s285
          %288 = dma.hbm_to_vmem [thread:$0]  %s6, 32, %s286, [#allocation12]
        $region36: #{tpu_custom_call.1} parent=11 // pred_fallthru
          _
      $region12: #{tpu_custom_call.1} parent=5 // pred_fallthru
        _
      %p289 = scmp.lt.s32.totalorder %s22, 2
      // Predicated region
      $region37: #{tpu_custom_call.1} parent=5 // pred_check
        %p290 = pneg %p289
      $region38: #{tpu_custom_call.1} parent=5 // pred_check_branch
        %292 = sbr.rel (%p290) target = $region40
      $region39: #{tpu_custom_call.1} parent=5 // pred_region
        // Predicated region
        $region41: #{tpu_custom_call.1} parent=39 // pred_check
          %p293 = pneg %p42
        $region42: #{tpu_custom_call.1} parent=39 // pred_check_branch
          %295 = sbr.rel (%p293) target = $region44
        $region43: #{tpu_custom_call.1} parent=39 // pred_region
          %s296 = sand.u32 %s32, 1
          %s297 = scalar_lea.sflag [#allocation3], %s296
          %s298 = sand.u32 %s32, 1
          %s299 = smul.addr %s298, 32
          %s300 = scalar_lea.vmem [#allocation2], %s299
          %s301 = smul.u32 8, %s22
          %s303 = ssub.s32 512, 512
          %304 = vsyncadd %s297, %s303
          %s305 = smul.addr %s301, 64
          %s306 = scalar_lea.hbm %s0, %s305
          %s307 = sshll.u32 %s300, 4
          %s308 = int_to_ptr.vmem [resolvable:$true] %s307
          %313 = dma.hbm_to_vmem [thread:$0]  %s306, 512, %s308, %s297, 64, 64, 4
        $region44: #{tpu_custom_call.1} parent=39 // pred_fallthru
          _
      $region40: #{tpu_custom_call.1} parent=5 // pred_fallthru
        _
      %p314 = scmp.le.s32.totalorder 1, %s22
      %p315 = scmp.lt.s32.totalorder %s22, 3
      %p316 = pnand %p314, %p315
      %p317 = pneg %p316
      // Predicated region
      $region45: #{tpu_custom_call.1} parent=5 // pred_check
        _
      $region46: #{tpu_custom_call.1} parent=5 // pred_check_branch
        %319 = sbr.rel (%p316) target = $region48
      $region47: #{tpu_custom_call.1} parent=5 // pred_region
        %s320 = ssub.s32 %s22, 1
        %s321 = sand.u32 %s35, 1
        %s322 = scalar_lea.sflag [#allocation3], %s321
        %s323 = sand.u32 %s35, 1
        %s324 = smul.addr %s323, 32
        %s325 = scalar_lea.vmem [#allocation2], %s324
        // Predicated region
        $region49: #{tpu_custom_call.1} parent=47 // pred_check
          %p326 = pneg %p48
        $region50: #{tpu_custom_call.1} parent=47 // pred_check_branch
          %328 = sbr.rel (%p326) target = $region52
        $region51: #{tpu_custom_call.1} parent=47 // pred_region
          %329 = dma.done %s322, 512
        $region52: #{tpu_custom_call.1} parent=47 // pred_fallthru
          _
        // Predicated region
        $region53: #{tpu_custom_call.1} parent=47 // pred_check
          %p330 = pneg %p69
        $region54: #{tpu_custom_call.1} parent=47 // pred_check_branch
          %332 = sbr.rel (%p330) target = $region56
        $region55: #{tpu_custom_call.1} parent=47 // pred_region
          %333 = dma.done [#allocation6], 256
        $region56: #{tpu_custom_call.1} parent=47 // pred_fallthru
          _
        // Predicated region
        $region57: #{tpu_custom_call.1} parent=47 // pred_check
          %p334 = pneg %p90
        $region58: #{tpu_custom_call.1} parent=47 // pred_check_branch
          %336 = sbr.rel (%p334) target = $region60
        $region59: #{tpu_custom_call.1} parent=47 // pred_region
          %337 = dma.done [#allocation6], 256
        $region60: #{tpu_custom_call.1} parent=47 // pred_fallthru
          _
        // Predicated region
        $region61: #{tpu_custom_call.1} parent=47 // pred_check
          %p338 = pneg %p111
        $region62: #{tpu_custom_call.1} parent=47 // pred_check_branch
          %340 = sbr.rel (%p338) target = $region64
        $region63: #{tpu_custom_call.1} parent=47 // pred_region
          %341 = dma.done [#allocation9], 256
        $region64: #{tpu_custom_call.1} parent=47 // pred_fallthru
          _
        // Predicated region
        $region65: #{tpu_custom_call.1} parent=47 // pred_check
          %p342 = pneg %p132
        $region66: #{tpu_custom_call.1} parent=47 // pred_check_branch
          %344 = sbr.rel (%p342) target = $region68
        $region67: #{tpu_custom_call.1} parent=47 // pred_region
          %345 = dma.done [#allocation9], 16
        $region68: #{tpu_custom_call.1} parent=47 // pred_fallthru
          _
        // Predicated region
        $region69: #{tpu_custom_call.1} parent=47 // pred_check
          %p346 = pneg %p153
        $region70: #{tpu_custom_call.1} parent=47 // pred_check_branch
          %348 = sbr.rel (%p346) target = $region72
        $region71: #{tpu_custom_call.1} parent=47 // pred_region
          %349 = dma.done [#allocation12], 256
        $region72: #{tpu_custom_call.1} parent=47 // pred_fallthru
          _
        // Predicated region
        $region73: #{tpu_custom_call.1} parent=47 // pred_check
          %p350 = pneg %p174
        $region74: #{tpu_custom_call.1} parent=47 // pred_check_branch
          %352 = sbr.rel (%p350) target = $region76
        $region75: #{tpu_custom_call.1} parent=47 // pred_region
          %353 = dma.done [#allocation12], 32
        $region76: #{tpu_custom_call.1} parent=47 // pred_fallthru
          _
        %s354 = sand.u32 %s35, 1
        %s355 = scalar_lea.sflag [#allocation3], %s354
        %s356 = sand.u32 %s35, 1
        %s357 = smul.addr %s356, 32
        %s358 = scalar_lea.vmem [#allocation2], %s357
        %p359 = pneg %p48
        %p360 = pneg %p45
        %p361 = pneg %p69
        %p362 = pneg %p66
        %p363 = pneg %p90
        %p364 = pneg %p87
        %p365 = pneg %p111
        %p366 = pneg %p108
        %p367 = pneg %p132
        %p368 = pneg %p129
        %p369 = pneg %p153
        %p370 = pneg %p150
        %p371 = pneg %p174
        %p372 = pneg %p171
        %p373 = pneg %p200
        %p374 = pneg %p197
        %s375 = sand.u32 %s187, 1
        %s376 = scalar_lea.sflag [#allocation4], %s375
        %s377 = sand.u32 %s187, 1
        %s378 = smul.addr %s377, 8
        %s379 = scalar_lea.vmem [#allocation14], %s378
        %s380 = smul.u32 8, %s27
        %s381 = smul.u32 8, %s27
        %v383 = vld [vmem:[%s325] sm:$0xf]
        %v384 = vld [vmem:[%s325 + $0x4] sm:$0xf]
        %v385 = vld [vmem:[%s325 + $0x8] sm:$0xf]
        %v386 = vld [vmem:[%s325 + $0xc] sm:$0xf]
        %v387 = vld [vmem:[%s325 + $0x10] sm:$0xf]
        %v388 = vld [vmem:[%s325 + $0x14] sm:$0xf]
        %v389 = vld [vmem:[%s325 + $0x18] sm:$0xf]
        %v390 = vld [vmem:[%s325 + $0x1c] sm:$0xf]
        %v391 = vld [vmem:[#allocation5] sm:$0xf]
        %v392 = vld [vmem:[#allocation5 + $0x4] sm:$0xf]
        %v393 = vld [vmem:[#allocation5 + $0x8] sm:$0xf]
        %v394 = vld [vmem:[#allocation5 + $0xc] sm:$0xf]
        %v403 = vunpack.c.l.b16 %v383
        %v404 = vunpack.c.l.b16 %v384
        %v405 = vunpack.c.l.b16 %v385
        %v406 = vunpack.c.l.b16 %v386
        %v407 = vunpack.c.l.b16 %v387
        %v408 = vunpack.c.l.b16 %v388
        %v409 = vunpack.c.l.b16 %v389
        %v410 = vunpack.c.l.b16 %v390
        %v411 = vpack.c.b16 %v403, %v403
        %v412 = vpack.c.b16 %v404, %v404
        %v413 = vpack.c.b16 %v405, %v405
        %v414 = vpack.c.b16 %v406, %v406
        %v415 = vpack.c.b16 %v407, %v407
        %v416 = vpack.c.b16 %v408, %v408
        %v417 = vpack.c.b16 %v409, %v409
        %v418 = vpack.c.b16 %v410, %v410
        %v419 = vunpack.c.l.b16 %v411
        %v420 = vunpack.c.l.b16 %v412
        %v421 = vunpack.c.l.b16 %v413
        %v422 = vunpack.c.l.b16 %v414
        %v423 = vunpack.c.l.b16 %v415
        %v424 = vunpack.c.l.b16 %v416
        %v425 = vunpack.c.l.b16 %v417
        %v426 = vunpack.c.l.b16 %v418
        %v427 = vrot.slane %v420, 7
        %vm428 = vcmask 1041409
        %v429 = vsel %vm428, %v427, %v419
        %v430 = vrot.slane %v421, 6
        %vm431 = vcmask 1042434
        %v432 = vsel %vm431, %v430, %v429
        %v433 = vrot.slane %v422, 5
        %vm434 = vcmask 1043459
        %v435 = vsel %vm434, %v433, %v432
        %v436 = vrot.slane %v423, 4
        %vm437 = vcmask 1044484
        %v438 = vsel %vm437, %v436, %v435
        %v439 = vrot.slane %v424, 3
        %vm440 = vcmask 1045509
        %v441 = vsel %vm440, %v439, %v438
        %v442 = vrot.slane %v425, 2
        %vm443 = vcmask 1046534
        %v444 = vsel %vm443, %v442, %v441
        %v445 = vrot.slane %v426, 1
        %vm446 = vcmask 1047559
        %v447 = vsel %vm446, %v445, %v444
        %v448 = vpack.c.b16 %v447, %v447
        %v453 = vunpack.c.l.b16 %v391
        %v454 = vunpack.c.l.b16 %v392
        %v455 = vunpack.c.l.b16 %v393
        %v456 = vunpack.c.l.b16 %v394
        %v457 = vpack.c.b16 %v454, %v453
        %v458 = vpack.c.b16 %v456, %v455
        %vm461 = vcmask 261120
        %v463 = vsel %vm461, %v448, 0
        %465 = vmatprep.subr.bf16.mxu0 0
        %466 = vmatpush1.bf16.msra.mxu0 %v457
        %467 = vmatprep.subr.bf16.mxu0 0
        %468 = vmatpush1.bf16.msra.mxu0 %v458
        %469 = vmatprep.subr.bf16.mxu0 0
        %470 = vmatpush1.bf16.msra.mxu0 0
        %471 = vmatprep.subr.bf16.mxu0 0
        %472 = vmatpush1.bf16.msra.mxu0 0
        %473 = vmatprep.subr.bf16.mxu0 0
        %474 = vmatpush1.bf16.msra.mxu0 0
        %475 = vmatprep.subr.bf16.mxu0 0
        %476 = vmatpush1.bf16.msra.mxu0 0
        %477 = vmatprep.subr.bf16.mxu0 0
        %478 = vmatpush1.bf16.msra.mxu0 0
        %479 = vmatprep.subr.bf16.mxu0 0
        %480 = vmatpush1.bf16.msra.mxu0 0
        %481 = vmatprep.subr.bf16.mxu0 0
        %482 = vmatpush1.bf16.msra.mxu0 0
        %483 = vmatprep.subr.bf16.mxu0 0
        %484 = vmatpush1.bf16.msra.mxu0 0
        %485 = vmatprep.subr.bf16.mxu0 0
        %486 = vmatpush1.bf16.msra.mxu0 0
        %487 = vmatprep.subr.bf16.mxu0 0
        %488 = vmatpush1.bf16.msra.mxu0 0
        %489 = vmatprep.subr.bf16.mxu0 0
        %490 = vmatpush1.bf16.msra.mxu0 0
        %491 = vmatprep.subr.bf16.mxu0 0
        %492 = vmatpush1.bf16.msra.mxu0 0
        %493 = vmatprep.subr.bf16.mxu0 0
        %494 = vmatpush1.bf16.msra.mxu0 0
        %495 = vmatprep.subr.bf16.mxu0 0
        %496 = vmatpush1.bf16.msra.mxu0 0
        %497 = vmatprep.mubr.bf16.mxu0 0
        %498 = vmatmul.mubr.bf16.gmra.mrb[0].mxu0 %v463
        %v499 = vpop.f32.mrb[0].mxu0
        %v500 = vadd.f32 0.0, %v499
        %v501 = vpop.f32.mrb[0].mxu0
        %v502 = vpop.f32.mrb[0].mxu0
        %v503 = vpop.f32.mrb[0].mxu0
        %504 = vdwg.mxu0
        %v505 = vld [vmem:[#allocation7] sm:$0xf]
        %v506 = vld [vmem:[#allocation7 + $0x4] sm:$0xf]
        %v507 = vld [vmem:[#allocation7 + $0x8] sm:$0xf]
        %v508 = vld [vmem:[#allocation7 + $0xc] sm:$0xf]
        %v509 = vpack.c.b16 %v404, %v403
        %v510 = vpack.c.b16 %v406, %v405
        %v511 = vpack.c.b16 %v408, %v407
        %v512 = vpack.c.b16 %v410, %v409
        %v517 = vunpack.c.l.b16 %v505
        %v518 = vunpack.c.l.b16 %v506
        %v519 = vunpack.c.l.b16 %v507
        %v520 = vunpack.c.l.b16 %v508
        %v521 = vpack.c.b16 %v518, %v517
        %v522 = vpack.c.b16 %v520, %v519
        %v526 = vsel %vm461, %v509, 0
        %v529 = vsel %vm461, %v510, 0
        %v532 = vsel %vm461, %v511, 0
        %v535 = vsel %vm461, %v512, 0
        %537 = vmatprep.subr.bf16.mxu0 0
        %538 = vmatpush1.bf16.msra.mxu0 %v521
        %539 = vmatprep.subr.bf16.mxu0 0
        %540 = vmatpush1.bf16.msra.mxu0 %v522
        %541 = vmatprep.subr.bf16.mxu0 0
        %542 = vmatpush1.bf16.msra.mxu0 0
        %543 = vmatprep.subr.bf16.mxu0 0
        %544 = vmatpush1.bf16.msra.mxu0 0
        %545 = vmatprep.subr.bf16.mxu0 0
        %546 = vmatpush1.bf16.msra.mxu0 0
        %547 = vmatprep.subr.bf16.mxu0 0
        %548 = vmatpush1.bf16.msra.mxu0 0
        %549 = vmatprep.subr.bf16.mxu0 0
        %550 = vmatpush1.bf16.msra.mxu0 0
        %551 = vmatprep.subr.bf16.mxu0 0
        %552 = vmatpush1.bf16.msra.mxu0 0
        %553 = vmatprep.subr.bf16.mxu0 0
        %554 = vmatpush1.bf16.msra.mxu0 0
        %555 = vmatprep.subr.bf16.mxu0 0
        %556 = vmatpush1.bf16.msra.mxu0 0
        %557 = vmatprep.subr.bf16.mxu0 0
        %558 = vmatpush1.bf16.msra.mxu0 0
        %559 = vmatprep.subr.bf16.mxu0 0
        %560 = vmatpush1.bf16.msra.mxu0 0
        %561 = vmatprep.subr.bf16.mxu0 0
        %562 = vmatpush1.bf16.msra.mxu0 0
        %563 = vmatprep.subr.bf16.mxu0 0
        %564 = vmatpush1.bf16.msra.mxu0 0
        %565 = vmatprep.subr.bf16.mxu0 0
        %566 = vmatpush1.bf16.msra.mxu0 0
        %567 = vmatprep.subr.bf16.mxu0 0
        %568 = vmatpush1.bf16.msra.mxu0 0
        %569 = vmatprep.mubr.bf16.mxu0 0
        %570 = vmatmul.mubr.bf16.gmra.mrb[0].mxu0 %v526
        %v571 = vpop.f32.mrb[0].mxu0
        %v572 = vadd.f32 0.0, %v571
        %v573 = vpop.f32.mrb[0].mxu0
        %v574 = vpop.f32.mrb[0].mxu0
        %v575 = vadd.f32 0.0, %v574
        %v576 = vpop.f32.mrb[0].mxu0
        %577 = vmatprep.mubr.bf16.mxu0 0
        %578 = vmatmul.mubr.bf16.gmra.mrb[0].mxu0 %v529
        %v579 = vpop.f32.mrb[0].mxu0
        %v580 = vadd.f32 0.0, %v579
        %v581 = vpop.f32.mrb[0].mxu0
        %v582 = vpop.f32.mrb[0].mxu0
        %v583 = vadd.f32 0.0, %v582
        %v584 = vpop.f32.mrb[0].mxu0
        %585 = vmatprep.mubr.bf16.mxu0 0
        %586 = vmatmul.mubr.bf16.gmra.mrb[0].mxu0 %v532
        %v587 = vpop.f32.mrb[0].mxu0
        %v588 = vadd.f32 0.0, %v587
        %v589 = vpop.f32.mrb[0].mxu0
        %v590 = vpop.f32.mrb[0].mxu0
        %v591 = vadd.f32 0.0, %v590
        %v592 = vpop.f32.mrb[0].mxu0
        %593 = vmatprep.mubr.bf16.mxu0 0
        %594 = vmatmul.mubr.bf16.gmra.mrb[0].mxu0 %v535
        %v595 = vpop.f32.mrb[0].mxu0
        %v596 = vadd.f32 0.0, %v595
        %v597 = vpop.f32.mrb[0].mxu0
        %v598 = vpop.f32.mrb[0].mxu0
        %v599 = vadd.f32 0.0, %v598
        %v600 = vpop.f32.mrb[0].mxu0
        %601 = vdwg.mxu0
        %v602 = vld [vmem:[#allocation11] sm:$0xf]
        %v603 = vld [vmem:[#allocation11 + $0x4] sm:$0xf]
        %v604 = vld [vmem:[#allocation11 + $0x8] sm:$0xf]
        %v605 = vld [vmem:[#allocation11 + $0xc] sm:$0xf]
        %v606 = vld [vmem:[#allocation13] sm:$0x3]
        %v608 = vcombine.high %v500, %v500
        %v610 = vunpack.c.l.s4 1966171168
        %v611 = vunpack.c.0.s8 %v610
        %v612 = vlaneseq
        %v613 = vshrl.u32 %v612, 7
        %v614 = vsub.s32 %v611, %v613
        %v615 = vrot.slane %v500, %v614
        %v617 = vunpack.c.l.s4 1966171168
        %v618 = vunpack.c.0.s8 %v617
        %v619 = vlaneseq
        %v620 = vshrl.u32 %v619, 7
        %v621 = vsub.s32 %v618, %v620
        %v622 = vrot.slane %v608, %v621
        %v623 = vcombine.high %v615, %v615
        %v624 = vcombine.high %v622, %v622
        %v626 = vunpack.c.l.s4 1966171168
        %v627 = vunpack.c.0.s8 %v626
        %v628 = vlaneseq
        %v629 = vshrl.u32 %v628, 7
        %v630 = vsub.s32 %v627, %v629
        %v631 = vrot.slane %v615, %v630
        %v633 = vunpack.c.l.s4 1966171168
        %v634 = vunpack.c.0.s8 %v633
        %v635 = vlaneseq
        %v636 = vshrl.u32 %v635, 7
        %v637 = vsub.s32 %v634, %v636
        %v638 = vrot.slane %v622, %v637
        %v640 = vunpack.c.l.s4 1966171168
        %v641 = vunpack.c.0.s8 %v640
        %v642 = vlaneseq
        %v643 = vshrl.u32 %v642, 7
        %v644 = vsub.s32 %v641, %v643
        %v645 = vrot.slane %v623, %v644
        %v647 = vunpack.c.l.s4 1966171168
        %v648 = vunpack.c.0.s8 %v647
        %v649 = vlaneseq
        %v650 = vshrl.u32 %v649, 7
        %v651 = vsub.s32 %v648, %v650
        %v652 = vrot.slane %v624, %v651
        %v653 = vcombine.high %v631, %v631
        %v654 = vcombine.high %v638, %v638
        %v655 = vcombine.high %v645, %v645
        %v656 = vcombine.high %v652, %v652
        %v657 = vlaneseq
        %v658 = vshrl.u32 %v657, 7
        %v659 = vsub.s32 0, %v658
        %v660 = vrot.slane %v631, %v659
        %v661 = vlaneseq
        %v662 = vshrl.u32 %v661, 7
        %v663 = vsub.s32 0, %v662
        %v664 = vrot.slane %v645, %v663
        %v665 = vlaneseq
        %v666 = vshrl.u32 %v665, 7
        %v667 = vsub.s32 0, %v666
        %v668 = vrot.slane %v653, %v667
        %v669 = vlaneseq
        %v670 = vshrl.u32 %v669, 7
        %v671 = vsub.s32 0, %v670
        %v672 = vrot.slane %v655, %v671
        %v673 = vlaneseq
        %v674 = vshrl.u32 %v673, 7
        %v675 = vsub.s32 0, %v674
        %v676 = vrot.slane %v638, %v675
        %v677 = vlaneseq
        %v678 = vshrl.u32 %v677, 7
        %v679 = vsub.s32 0, %v678
        %v680 = vrot.slane %v652, %v679
        %v681 = vlaneseq
        %v682 = vshrl.u32 %v681, 7
        %v683 = vsub.s32 0, %v682
        %v684 = vrot.slane %v654, %v683
        %v685 = vlaneseq
        %v686 = vshrl.u32 %v685, 7
        %v687 = vsub.s32 0, %v686
        %v688 = vrot.slane %v656, %v687
        %v697 = vmul.f32 %v660, %v572
        %v698 = vmul.f32 %v664, %v575
        %v699 = vmul.f32 %v668, %v580
        %v700 = vmul.f32 %v672, %v583
        %v701 = vmul.f32 %v676, %v588
        %v702 = vmul.f32 %v680, %v591
        %v703 = vmul.f32 %v684, %v596
        %v704 = vmul.f32 %v688, %v599
        %v705 = vpack.c.bf16 %v697, %v697
        %v706 = vpack.c.bf16 %v698, %v698
        %v707 = vpack.c.bf16 %v699, %v699
        %v708 = vpack.c.bf16 %v700, %v700
        %v709 = vpack.c.bf16 %v701, %v701
        %v710 = vpack.c.bf16 %v702, %v702
        %v711 = vpack.c.bf16 %v703, %v703
        %v712 = vpack.c.bf16 %v704, %v704
        %v721 = vunpack.c.l.b16 %v705
        %v722 = vunpack.c.l.b16 %v706
        %v723 = vunpack.c.l.b16 %v707
        %v724 = vunpack.c.l.b16 %v708
        %v725 = vunpack.c.l.b16 %v709
        %v726 = vunpack.c.l.b16 %v710
        %v727 = vunpack.c.l.b16 %v711
        %v728 = vunpack.c.l.b16 %v712
        %v729 = vpack.c.b16 %v722, %v721
        %v730 = vpack.c.b16 %v724, %v723
        %v731 = vpack.c.b16 %v726, %v725
        %v732 = vpack.c.b16 %v728, %v727
        %v737 = vunpack.c.l.b16 %v602
        %v738 = vunpack.c.l.b16 %v603
        %v739 = vunpack.c.l.b16 %v604
        %v740 = vunpack.c.l.b16 %v605
        %v741 = vpack.c.b16 %v738, %v737
        %v742 = vpack.c.b16 %v740, %v739
        %v746 = vsel %vm461, %v729, 0
        %v749 = vsel %vm461, %v730, 0
        %v752 = vsel %vm461, %v731, 0
        %v755 = vsel %vm461, %v732, 0
        %757 = vmatprep.subr.bf16.mxu0 0
        %758 = vmatpush1.bf16.msra.mxu0 %v741
        %759 = vmatprep.subr.bf16.mxu0 0
        %760 = vmatpush1.bf16.msra.mxu0 %v742
        %761 = vmatprep.subr.bf16.mxu0 0
        %762 = vmatpush1.bf16.msra.mxu0 0
        %763 = vmatprep.subr.bf16.mxu0 0
        %764 = vmatpush1.bf16.msra.mxu0 0
        %765 = vmatprep.subr.bf16.mxu0 0
        %766 = vmatpush1.bf16.msra.mxu0 0
        %767 = vmatprep.subr.bf16.mxu0 0
        %768 = vmatpush1.bf16.msra.mxu0 0
        %769 = vmatprep.subr.bf16.mxu0 0
        %770 = vmatpush1.bf16.msra.mxu0 0
        %771 = vmatprep.subr.bf16.mxu0 0
        %772 = vmatpush1.bf16.msra.mxu0 0
        %773 = vmatprep.subr.bf16.mxu0 0
        %774 = vmatpush1.bf16.msra.mxu0 0
        %775 = vmatprep.subr.bf16.mxu0 0
        %776 = vmatpush1.bf16.msra.mxu0 0
        %777 = vmatprep.subr.bf16.mxu0 0
        %778 = vmatpush1.bf16.msra.mxu0 0
        %779 = vmatprep.subr.bf16.mxu0 0
        %780 = vmatpush1.bf16.msra.mxu0 0
        %781 = vmatprep.subr.bf16.mxu0 0
        %782 = vmatpush1.bf16.msra.mxu0 0
        %783 = vmatprep.subr.bf16.mxu0 0
        %784 = vmatpush1.bf16.msra.mxu0 0
        %785 = vmatprep.subr.bf16.mxu0 0
        %786 = vmatpush1.bf16.msra.mxu0 0
        %787 = vmatprep.subr.bf16.mxu0 0
        %788 = vmatpush1.bf16.msra.mxu0 0
        %789 = vmatprep.mubr.bf16.mxu0 0
        %790 = vmatmul.mubr.bf16.gmra.mrb[0].mxu0 %v746
        %v791 = vpop.f32.mrb[0].mxu0
        %v792 = vadd.f32 0.0, %v791
        %v793 = vpop.f32.mrb[0].mxu0
        %v794 = vpop.f32.mrb[0].mxu0
        %v795 = vadd.f32 0.0, %v794
        %v796 = vpop.f32.mrb[0].mxu0
        %797 = vmatprep.mubr.bf16.mxu0 0
        %798 = vmatmul.mubr.bf16.gmra.mrb[0].mxu0 %v749
        %v799 = vpop.f32.mrb[0].mxu0
        %v800 = vadd.f32 0.0, %v799
        %v801 = vpop.f32.mrb[0].mxu0
        %v802 = vpop.f32.mrb[0].mxu0
        %v803 = vadd.f32 0.0, %v802
        %v804 = vpop.f32.mrb[0].mxu0
        %805 = vmatprep.mubr.bf16.mxu0 0
        %806 = vmatmul.mubr.bf16.gmra.mrb[0].mxu0 %v752
        %v807 = vpop.f32.mrb[0].mxu0
        %v808 = vadd.f32 0.0, %v807
        %v809 = vpop.f32.mrb[0].mxu0
        %v810 = vpop.f32.mrb[0].mxu0
        %v811 = vadd.f32 0.0, %v810
        %v812 = vpop.f32.mrb[0].mxu0
        %813 = vmatprep.mubr.bf16.mxu0 0
        %814 = vmatmul.mubr.bf16.gmra.mrb[0].mxu0 %v755
        %v815 = vpop.f32.mrb[0].mxu0
        %v816 = vadd.f32 0.0, %v815
        %v817 = vpop.f32.mrb[0].mxu0
        %v818 = vpop.f32.mrb[0].mxu0
        %v819 = vadd.f32 0.0, %v818
        %v820 = vpop.f32.mrb[0].mxu0
        %821 = vdwg.mxu0
        %v822 = vlaneseq
        %v823 = vshrl.u32 %v822, 7
        %vm824 = vcmp.eq.s32.totalorder %v823, 0
        %v825 = vsel %vm824, -1e+30, %v792
        %v826 = vsel %vm824, -1e+30, %v795
        %v827 = vsel %vm824, -1e+30, %v800
        %v828 = vsel %vm824, -1e+30, %v803
        %v829 = vsel %vm824, -1e+30, %v808
        %v830 = vsel %vm824, -1e+30, %v811
        %v831 = vsel %vm824, -1e+30, %v816
        %v832 = vsel %vm824, -1e+30, %v819
        %vm833 = vcmask 31744
        %v834 = vsel %vm833, %v825, -inf
        %v835 = vrot.slane %v834, 4
        %v836 = vmax.f32 %v834, %v835
        %v837 = vrot.slane %v836, 2
        %v838 = vmax.f32 %v836, %v837
        %v839 = vrot.slane %v838, 1
        %v840 = vmax.f32 %v838, %v839
        %v841 = vsel %vm833, %v826, -inf
        %v842 = vrot.slane %v841, 4
        %v843 = vmax.f32 %v841, %v842
        %v844 = vrot.slane %v843, 2
        %v845 = vmax.f32 %v843, %v844
        %v846 = vrot.slane %v845, 1
        %v847 = vmax.f32 %v845, %v846
        %v848 = vsel %vm833, %v827, -inf
        %v849 = vrot.slane %v848, 4
        %v850 = vmax.f32 %v848, %v849
        %v851 = vrot.slane %v850, 2
        %v852 = vmax.f32 %v850, %v851
        %v853 = vrot.slane %v852, 1
        %v854 = vmax.f32 %v852, %v853
        %v855 = vsel %vm833, %v828, -inf
        %v856 = vrot.slane %v855, 4
        %v857 = vmax.f32 %v855, %v856
        %v858 = vrot.slane %v857, 2
        %v859 = vmax.f32 %v857, %v858
        %v860 = vrot.slane %v859, 1
        %v861 = vmax.f32 %v859, %v860
        %v862 = vsel %vm833, %v829, -inf
        %v863 = vrot.slane %v862, 4
        %v864 = vmax.f32 %v862, %v863
        %v865 = vrot.slane %v864, 2
        %v866 = vmax.f32 %v864, %v865
        %v867 = vrot.slane %v866, 1
        %v868 = vmax.f32 %v866, %v867
        %v869 = vsel %vm833, %v830, -inf
        %v870 = vrot.slane %v869, 4
        %v871 = vmax.f32 %v869, %v870
        %v872 = vrot.slane %v871, 2
        %v873 = vmax.f32 %v871, %v872
        %v874 = vrot.slane %v873, 1
        %v875 = vmax.f32 %v873, %v874
        %v876 = vsel %vm833, %v831, -inf
        %v877 = vrot.slane %v876, 4
        %v878 = vmax.f32 %v876, %v877
        %v879 = vrot.slane %v878, 2
        %v880 = vmax.f32 %v878, %v879
        %v881 = vrot.slane %v880, 1
        %v882 = vmax.f32 %v880, %v881
        %v883 = vsel %vm833, %v832, -inf
        %v884 = vrot.slane %v883, 4
        %v885 = vmax.f32 %v883, %v884
        %v886 = vrot.slane %v885, 2
        %v887 = vmax.f32 %v885, %v886
        %v888 = vrot.slane %v887, 1
        %v889 = vmax.f32 %v887, %v888
        %v890 = vsub.f32 %v825, %v840
        %v891 = vsub.f32 %v826, %v847
        %v892 = vsub.f32 %v827, %v854
        %v893 = vsub.f32 %v828, %v861
        %v894 = vsub.f32 %v829, %v868
        %v895 = vsub.f32 %v830, %v875
        %v896 = vsub.f32 %v831, %v882
        %v897 = vsub.f32 %v832, %v889
        %v898 = vmul.f32 %v890, 1.442695
        %v899 = vpow.pop %v898
        %v900 = vmul.f32 %v891, 1.442695
        %v901 = vpow.pop %v900
        %v902 = vmul.f32 %v892, 1.442695
        %v903 = vpow.pop %v902
        %v904 = vmul.f32 %v893, 1.442695
        %v905 = vpow.pop %v904
        %v906 = vmul.f32 %v894, 1.442695
        %v907 = vpow.pop %v906
        %v908 = vmul.f32 %v895, 1.442695
        %v909 = vpow.pop %v908
        %v910 = vmul.f32 %v896, 1.442695
        %v911 = vpow.pop %v910
        %v912 = vmul.f32 %v897, 1.442695
        %v913 = vpow.pop %v912
        %v914 = vsel %vm833, %v899, 0.0
        %v915 = vrot.slane %v914, 4
        %v916 = vadd.f32 %v914, %v915
        %v917 = vrot.slane %v916, 2
        %v918 = vadd.f32 %v916, %v917
        %v919 = vrot.slane %v918, 1
        %v920 = vadd.f32 %v918, %v919
        %v921 = vsel %vm833, %v901, 0.0
        %v922 = vrot.slane %v921, 4
        %v923 = vadd.f32 %v921, %v922
        %v924 = vrot.slane %v923, 2
        %v925 = vadd.f32 %v923, %v924
        %v926 = vrot.slane %v925, 1
        %v927 = vadd.f32 %v925, %v926
        %v928 = vsel %vm833, %v903, 0.0
        %v929 = vrot.slane %v928, 4
        %v930 = vadd.f32 %v928, %v929
        %v931 = vrot.slane %v930, 2
        %v932 = vadd.f32 %v930, %v931
        %v933 = vrot.slane %v932, 1
        %v934 = vadd.f32 %v932, %v933
        %v935 = vsel %vm833, %v905, 0.0
        %v936 = vrot.slane %v935, 4
        %v937 = vadd.f32 %v935, %v936
        %v938 = vrot.slane %v937, 2
        %v939 = vadd.f32 %v937, %v938
        %v940 = vrot.slane %v939, 1
        %v941 = vadd.f32 %v939, %v940
        %v942 = vsel %vm833, %v907, 0.0
        %v943 = vrot.slane %v942, 4
        %v944 = vadd.f32 %v942, %v943
        %v945 = vrot.slane %v944, 2
        %v946 = vadd.f32 %v944, %v945
        %v947 = vrot.slane %v946, 1
        %v948 = vadd.f32 %v946, %v947
        %v949 = vsel %vm833, %v909, 0.0
        %v950 = vrot.slane %v949, 4
        %v951 = vadd.f32 %v949, %v950
        %v952 = vrot.slane %v951, 2
        %v953 = vadd.f32 %v951, %v952
        %v954 = vrot.slane %v953, 1
        %v955 = vadd.f32 %v953, %v954
        %v956 = vsel %vm833, %v911, 0.0
        %v957 = vrot.slane %v956, 4
        %v958 = vadd.f32 %v956, %v957
        %v959 = vrot.slane %v958, 2
        %v960 = vadd.f32 %v958, %v959
        %v961 = vrot.slane %v960, 1
        %v962 = vadd.f32 %v960, %v961
        %v963 = vsel %vm833, %v913, 0.0
        %v964 = vrot.slane %v963, 4
        %v965 = vadd.f32 %v963, %v964
        %v966 = vrot.slane %v965, 2
        %v967 = vadd.f32 %v965, %v966
        %v968 = vrot.slane %v967, 1
        %v969 = vadd.f32 %v967, %v968
        %v970 = vpack.c.bf16 %v901, %v899
        %v971 = vpack.c.bf16 %v905, %v903
        %v972 = vpack.c.bf16 %v909, %v907
        %v973 = vpack.c.bf16 %v913, %v911
        %v975 = vsel %vm833, %v970, 0
        %v978 = vsel %vm833, %v971, 0
        %v981 = vsel %vm833, %v972, 0
        %v984 = vsel %vm833, %v973, 0
        %vm986 = vcmask 1041408
        %v988 = vsel %vm986, %v606, 0
        %990 = vmatprep.subr.bf16.mxu0 0
        %991 = vmatpush1.bf16.msra.mxu0 %v988
        %992 = vmatprep.subr.bf16.mxu0 0
        %993 = vmatpush1.bf16.msra.mxu0 0
        %994 = vmatprep.subr.bf16.mxu0 0
        %995 = vmatpush1.bf16.msra.mxu0 0
        %996 = vmatprep.subr.bf16.mxu0 0
        %997 = vmatpush1.bf16.msra.mxu0 0
        %998 = vmatprep.subr.bf16.mxu0 0
        %999 = vmatpush1.bf16.msra.mxu0 0
        %1000 = vmatprep.subr.bf16.mxu0 0
        %1001 = vmatpush1.bf16.msra.mxu0 0
        %1002 = vmatprep.subr.bf16.mxu0 0
        %1003 = vmatpush1.bf16.msra.mxu0 0
        %1004 = vmatprep.subr.bf16.mxu0 0
        %1005 = vmatpush1.bf16.msra.mxu0 0
        %1006 = vmatprep.subr.bf16.mxu0 0
        %1007 = vmatpush1.bf16.msra.mxu0 0
        %1008 = vmatprep.subr.bf16.mxu0 0
        %1009 = vmatpush1.bf16.msra.mxu0 0
        %1010 = vmatprep.subr.bf16.mxu0 0
        %1011 = vmatpush1.bf16.msra.mxu0 0
        %1012 = vmatprep.subr.bf16.mxu0 0
        %1013 = vmatpush1.bf16.msra.mxu0 0
        %1014 = vmatprep.subr.bf16.mxu0 0
        %1015 = vmatpush1.bf16.msra.mxu0 0
        %1016 = vmatprep.subr.bf16.mxu0 0
        %1017 = vmatpush1.bf16.msra.mxu0 0
        %1018 = vmatprep.subr.bf16.mxu0 0
        %1019 = vmatpush1.bf16.msra.mxu0 0
        %1020 = vmatprep.subr.bf16.mxu0 0
        %1021 = vmatpush1.bf16.msra.mxu0 0
        %1022 = vmatprep.mubr.bf16.mxu0 0
        %1023 = vmatmul.mubr.bf16.gmra.mrb[0].mxu0 %v975
        %v1024 = vpop.f32.mrb[0].mxu0
        %v1025 = vadd.f32 0.0, %v1024
        %v1026 = vpop.f32.mrb[0].mxu0
        %v1027 = vpop.f32.mrb[0].mxu0
        %v1028 = vadd.f32 0.0, %v1027
        %v1029 = vpop.f32.mrb[0].mxu0
        %1030 = vmatprep.mubr.bf16.mxu0 0
        %1031 = vmatmul.mubr.bf16.gmra.mrb[0].mxu0 %v978
        %v1032 = vpop.f32.mrb[0].mxu0
        %v1033 = vadd.f32 0.0, %v1032
        %v1034 = vpop.f32.mrb[0].mxu0
        %v1035 = vpop.f32.mrb[0].mxu0
        %v1036 = vadd.f32 0.0, %v1035
        %v1037 = vpop.f32.mrb[0].mxu0
        %1038 = vmatprep.mubr.bf16.mxu0 0
        %1039 = vmatmul.mubr.bf16.gmra.mrb[0].mxu0 %v981
        %v1040 = vpop.f32.mrb[0].mxu0
        %v1041 = vadd.f32 0.0, %v1040
        %v1042 = vpop.f32.mrb[0].mxu0
        %v1043 = vpop.f32.mrb[0].mxu0
        %v1044 = vadd.f32 0.0, %v1043
        %v1045 = vpop.f32.mrb[0].mxu0
        %1046 = vmatprep.mubr.bf16.mxu0 0
        %1047 = vmatmul.mubr.bf16.gmra.mrb[0].mxu0 %v984
        %v1048 = vpop.f32.mrb[0].mxu0
        %v1049 = vadd.f32 0.0, %v1048
        %v1050 = vpop.f32.mrb[0].mxu0
        %v1051 = vpop.f32.mrb[0].mxu0
        %v1052 = vadd.f32 0.0, %v1051
        %v1053 = vpop.f32.mrb[0].mxu0
        %1054 = vdwg.mxu0
        %1063 = vrot.lane.b32.xlu0 %v572, 96
        %v1064 = vpop.permute.xlu0 %1063
        %1065 = vrot.lane.b32.xlu0 %v575, 96
        %v1066 = vpop.permute.xlu0 %1065
        %1067 = vrot.lane.b32.xlu0 %v580, 96
        %v1068 = vpop.permute.xlu0 %1067
        %1069 = vrot.lane.b32.xlu0 %v583, 96
        %v1070 = vpop.permute.xlu0 %1069
        %1071 = vrot.lane.b32.xlu0 %v588, 96
        %v1072 = vpop.permute.xlu0 %1071
        %1073 = vrot.lane.b32.xlu0 %v591, 96
        %v1074 = vpop.permute.xlu0 %1073
        %1075 = vrot.lane.b32.xlu0 %v596, 96
        %v1076 = vpop.permute.xlu0 %1075
        %1077 = vrot.lane.b32.xlu0 %v599, 96
        %v1078 = vpop.permute.xlu0 %1077
        %v1087 = vmul.f32 %v1025, %v1064
        %v1088 = vmul.f32 %v1028, %v1066
        %v1089 = vmul.f32 %v1033, %v1068
        %v1090 = vmul.f32 %v1036, %v1070
        %v1091 = vmul.f32 %v1041, %v1072
        %v1092 = vmul.f32 %v1044, %v1074
        %v1093 = vmul.f32 %v1049, %v1076
        %v1094 = vmul.f32 %v1052, %v1078
        %v1095 = vsel %vm461, %v1087, 0.0
        %v1096 = vrot.slane %v1095, 4
        %v1097 = vadd.f32 %v1095, %v1096
        %v1098 = vrot.slane %v1097, 2
        %v1099 = vadd.f32 %v1097, %v1098
        %v1100 = vrot.slane %v1099, 1
        %v1101 = vadd.f32 %v1099, %v1100
        %v1102 = vsel %vm461, %v1088, 0.0
        %v1103 = vrot.slane %v1102, 4
        %v1104 = vadd.f32 %v1102, %v1103
        %v1105 = vrot.slane %v1104, 2
        %v1106 = vadd.f32 %v1104, %v1105
        %v1107 = vrot.slane %v1106, 1
        %v1108 = vadd.f32 %v1106, %v1107
        %v1109 = vsel %vm461, %v1089, 0.0
        %v1110 = vrot.slane %v1109, 4
        %v1111 = vadd.f32 %v1109, %v1110
        %v1112 = vrot.slane %v1111, 2
        %v1113 = vadd.f32 %v1111, %v1112
        %v1114 = vrot.slane %v1113, 1
        %v1115 = vadd.f32 %v1113, %v1114
        %v1116 = vsel %vm461, %v1090, 0.0
        %v1117 = vrot.slane %v1116, 4
        %v1118 = vadd.f32 %v1116, %v1117
        %v1119 = vrot.slane %v1118, 2
        %v1120 = vadd.f32 %v1118, %v1119
        %v1121 = vrot.slane %v1120, 1
        %v1122 = vadd.f32 %v1120, %v1121
        %v1123 = vsel %vm461, %v1091, 0.0
        %v1124 = vrot.slane %v1123, 4
        %v1125 = vadd.f32 %v1123, %v1124
        %v1126 = vrot.slane %v1125, 2
        %v1127 = vadd.f32 %v1125, %v1126
        %v1128 = vrot.slane %v1127, 1
        %v1129 = vadd.f32 %v1127, %v1128
        %v1130 = vsel %vm461, %v1092, 0.0
        %v1131 = vrot.slane %v1130, 4
        %v1132 = vadd.f32 %v1130, %v1131
        %v1133 = vrot.slane %v1132, 2
        %v1134 = vadd.f32 %v1132, %v1133
        %v1135 = vrot.slane %v1134, 1
        %v1136 = vadd.f32 %v1134, %v1135
        %v1137 = vsel %vm461, %v1093, 0.0
        %v1138 = vrot.slane %v1137, 4
        %v1139 = vadd.f32 %v1137, %v1138
        %v1140 = vrot.slane %v1139, 2
        %v1141 = vadd.f32 %v1139, %v1140
        %v1142 = vrot.slane %v1141, 1
        %v1143 = vadd.f32 %v1141, %v1142
        %v1144 = vsel %vm461, %v1094, 0.0
        %v1145 = vrot.slane %v1144, 4
        %v1146 = vadd.f32 %v1144, %v1145
        %v1147 = vrot.slane %v1146, 2
        %v1148 = vadd.f32 %v1146, %v1147
        %v1149 = vrot.slane %v1148, 1
        %v1150 = vadd.f32 %v1148, %v1149
        %v1151 = vrcp.pop %v920
        %v1152 = vrcp.pop %v927
        %v1153 = vrcp.pop %v934
        %v1154 = vrcp.pop %v941
        %v1155 = vrcp.pop %v948
        %v1156 = vrcp.pop %v955
        %v1157 = vrcp.pop %v962
        %v1158 = vrcp.pop %v969
        %v1159 = vunpack.c.l.bf16 %v606
        %v1168 = vsel %vm428, %v1152, %v1151
        %v1169 = vsel %vm431, %v1153, %v1168
        %v1170 = vsel %vm434, %v1154, %v1169
        %v1171 = vsel %vm437, %v1155, %v1170
        %v1172 = vsel %vm440, %v1156, %v1171
        %v1173 = vsel %vm443, %v1157, %v1172
        %v1174 = vsel %vm446, %v1158, %v1173
        %v1175 = vsel %vm833, %v1174, 0
        %vm1177 = vcmask 1043456
        %v1179 = vsel %vm1177, %v1159, 0
        %1181 = vmatprep.subr.mxu0 0.0
        %1182 = vmatpush1.msra.mxu0 %v1179
        %1183 = vmatprep.subr.mxu0 0.0
        %1184 = vmatpush1.msra.mxu0 0.0
        %1185 = vmatprep.subr.mxu0 0.0
        %1186 = vmatpush1.msra.mxu0 0.0
        %1187 = vmatprep.subr.mxu0 0.0
        %1188 = vmatpush1.msra.mxu0 0.0
        %1189 = vmatprep.subr.mxu0 0.0
        %1190 = vmatpush1.msra.mxu0 0.0
        %1191 = vmatprep.subr.mxu0 0.0
        %1192 = vmatpush1.msra.mxu0 0.0
        %1193 = vmatprep.subr.mxu0 0.0
        %1194 = vmatpush1.msra.mxu0 0.0
        %1195 = vmatprep.subr.mxu0 0.0
        %1196 = vmatpush1.msra.mxu0 0.0
        %1197 = vmatprep.subr.mxu0 0.0
        %1198 = vmatpush1.msra.mxu0 0.0
        %1199 = vmatprep.subr.mxu0 0.0
        %1200 = vmatpush1.msra.mxu0 0.0
        %1201 = vmatprep.subr.mxu0 0.0
        %1202 = vmatpush1.msra.mxu0 0.0
        %1203 = vmatprep.subr.mxu0 0.0
        %1204 = vmatpush1.msra.mxu0 0.0
        %1205 = vmatprep.subr.mxu0 0.0
        %1206 = vmatpush1.msra.mxu0 0.0
        %1207 = vmatprep.subr.mxu0 0.0
        %1208 = vmatpush1.msra.mxu0 0.0
        %1209 = vmatprep.subr.mxu0 0.0
        %1210 = vmatpush1.msra.mxu0 0.0
        %1211 = vmatprep.subr.mxu0 0.0
        %1212 = vmatpush1.msra.mxu0 0.0
        %1213 = vmatprep.subr.mxu0 0.0
        %1214 = vmatpush1.msra.mxu0 0.0
        %1215 = vmatprep.subr.mxu0 0.0
        %1216 = vmatpush1.msra.mxu0 0.0
        %1217 = vmatprep.subr.mxu0 0.0
        %1218 = vmatpush1.msra.mxu0 0.0
        %1219 = vmatprep.subr.mxu0 0.0
        %1220 = vmatpush1.msra.mxu0 0.0
        %1221 = vmatprep.subr.mxu0 0.0
        %1222 = vmatpush1.msra.mxu0 0.0
        %1223 = vmatprep.subr.mxu0 0.0
        %1224 = vmatpush1.msra.mxu0 0.0
        %1225 = vmatprep.subr.mxu0 0.0
        %1226 = vmatpush1.msra.mxu0 0.0
        %1227 = vmatprep.subr.mxu0 0.0
        %1228 = vmatpush1.msra.mxu0 0.0
        %1229 = vmatprep.subr.mxu0 0.0
        %1230 = vmatpush1.msra.mxu0 0.0
        %1231 = vmatprep.subr.mxu0 0.0
        %1232 = vmatpush1.msra.mxu0 0.0
        %1233 = vmatprep.subr.mxu0 0.0
        %1234 = vmatpush1.msra.mxu0 0.0
        %1235 = vmatprep.subr.mxu0 0.0
        %1236 = vmatpush1.msra.mxu0 0.0
        %1237 = vmatprep.subr.mxu0 0.0
        %1238 = vmatpush1.msra.mxu0 0.0
        %1239 = vmatprep.subr.mxu0 0.0
        %1240 = vmatpush1.msra.mxu0 0.0
        %1241 = vmatprep.subr.mxu0 0.0
        %1242 = vmatpush1.msra.mxu0 0.0
        %1243 = vmatprep.subr.mxu0 0.0
        %1244 = vmatpush1.msra.mxu0 0.0
        %1245 = vmatprep.mubr.f32.mxu0 0.0
        %1246 = vmatmul.mubr.f32.gmra.mrb[0].mxu0 %v1175
        %v1247 = vpop.f32.mrb[0].mxu0
        %v1248 = vadd.f32 0.0, %v1247
        %v1249 = vpop.f32.mrb[0].mxu0
        %1250 = vdwg.mxu0
        %v1252 = vrot.slane %v1248, 1
        %v1253 = vrot.slane %v1248, 2
        %v1254 = vrot.slane %v1248, 3
        %v1255 = vrot.slane %v1248, 4
        %v1256 = vrot.slane %v1248, 5
        %v1257 = vrot.slane %v1248, 6
        %v1258 = vrot.slane %v1248, 7
        %v1267 = vmul.f32 %v1101, %v1248
        %v1268 = vmul.f32 %v1108, %v1252
        %v1269 = vmul.f32 %v1115, %v1253
        %v1270 = vmul.f32 %v1122, %v1254
        %v1271 = vmul.f32 %v1129, %v1255
        %v1272 = vmul.f32 %v1136, %v1256
        %v1273 = vmul.f32 %v1143, %v1257
        %v1274 = vmul.f32 %v1150, %v1258
        %v1275 = vpack.c.bf16 %v1267, %v1267
        %v1276 = vpack.c.bf16 %v1268, %v1268
        %v1277 = vpack.c.bf16 %v1269, %v1269
        %v1278 = vpack.c.bf16 %v1270, %v1270
        %v1279 = vpack.c.bf16 %v1271, %v1271
        %v1280 = vpack.c.bf16 %v1272, %v1272
        %v1281 = vpack.c.bf16 %v1273, %v1273
        %v1282 = vpack.c.bf16 %v1274, %v1274
        %v1283 = vld [vmem:[#allocation8] sm:$0xf]
        %v1284 = vld [vmem:[#allocation8 + $0x4] sm:$0xf]
        %v1285 = vld [vmem:[#allocation8 + $0x8] sm:$0xf]
        %v1286 = vld [vmem:[#allocation8 + $0xc] sm:$0xf]
        %v1287 = vld [vmem:[#allocation10] sm:$0x1]
        %v1289 = vlaneseq
        %v1290 = vshrl.u32 %v1289, 7
        %v1291 = vsub.s32 0, %v1290
        %v1292 = vrot.slane %v1287, %v1291
        %v1302 = vunpack.c.l.b16 %v1275
        %v1303 = vunpack.c.l.b16 %v1276
        %v1304 = vunpack.c.l.b16 %v1277
        %v1305 = vunpack.c.l.b16 %v1278
        %v1306 = vunpack.c.l.b16 %v1279
        %v1307 = vunpack.c.l.b16 %v1280
        %v1308 = vunpack.c.l.b16 %v1281
        %v1309 = vunpack.c.l.b16 %v1282
        %v1310 = vrot.slane %v1303, 7
        %v1311 = vsel %vm428, %v1310, %v1302
        %v1312 = vrot.slane %v1304, 6
        %v1313 = vsel %vm431, %v1312, %v1311
        %v1314 = vrot.slane %v1305, 5
        %v1315 = vsel %vm434, %v1314, %v1313
        %v1316 = vrot.slane %v1306, 4
        %v1317 = vsel %vm437, %v1316, %v1315
        %v1318 = vrot.slane %v1307, 3
        %v1319 = vsel %vm440, %v1318, %v1317
        %v1320 = vrot.slane %v1308, 2
        %v1321 = vsel %vm443, %v1320, %v1319
        %v1322 = vrot.slane %v1309, 1
        %v1323 = vsel %vm446, %v1322, %v1321
        %v1324 = vpack.c.b16 %v1323, %v1323
        %v1329 = vunpack.c.l.b16 %v1283
        %v1330 = vunpack.c.l.b16 %v1284
        %v1331 = vunpack.c.l.b16 %v1285
        %v1332 = vunpack.c.l.b16 %v1286
        %v1333 = vpack.c.b16 %v1330, %v1329
        %v1334 = vpack.c.b16 %v1332, %v1331
        %v1338 = vsel %vm461, %v1324, 0
        %1340 = vmatprep.subr.bf16.mxu0 0
        %1341 = vmatpush1.bf16.msra.mxu0 %v1333
        %1342 = vmatprep.subr.bf16.mxu0 0
        %1343 = vmatpush1.bf16.msra.mxu0 %v1334
        %1344 = vmatprep.subr.bf16.mxu0 0
        %1345 = vmatpush1.bf16.msra.mxu0 0
        %1346 = vmatprep.subr.bf16.mxu0 0
        %1347 = vmatpush1.bf16.msra.mxu0 0
        %1348 = vmatprep.subr.bf16.mxu0 0
        %1349 = vmatpush1.bf16.msra.mxu0 0
        %1350 = vmatprep.subr.bf16.mxu0 0
        %1351 = vmatpush1.bf16.msra.mxu0 0
        %1352 = vmatprep.subr.bf16.mxu0 0
        %1353 = vmatpush1.bf16.msra.mxu0 0
        %1354 = vmatprep.subr.bf16.mxu0 0
        %1355 = vmatpush1.bf16.msra.mxu0 0
        %1356 = vmatprep.subr.bf16.mxu0 0
        %1357 = vmatpush1.bf16.msra.mxu0 0
        %1358 = vmatprep.subr.bf16.mxu0 0
        %1359 = vmatpush1.bf16.msra.mxu0 0
        %1360 = vmatprep.subr.bf16.mxu0 0
        %1361 = vmatpush1.bf16.msra.mxu0 0
        %1362 = vmatprep.subr.bf16.mxu0 0
        %1363 = vmatpush1.bf16.msra.mxu0 0
        %1364 = vmatprep.subr.bf16.mxu0 0
        %1365 = vmatpush1.bf16.msra.mxu0 0
        %1366 = vmatprep.subr.bf16.mxu0 0
        %1367 = vmatpush1.bf16.msra.mxu0 0
        %1368 = vmatprep.subr.bf16.mxu0 0
        %1369 = vmatpush1.bf16.msra.mxu0 0
        %1370 = vmatprep.subr.bf16.mxu0 0
        %1371 = vmatpush1.bf16.msra.mxu0 0
        %1372 = vmatprep.mubr.bf16.mxu0 0
        %1373 = vmatmul.mubr.bf16.gmra.mrb[0].mxu0 %v1338
        %v1374 = vpop.f32.mrb[0].mxu0
        %v1375 = vadd.f32 %v1292, %v1374
        %v1376 = vpop.f32.mrb[0].mxu0
        %v1377 = vpop.f32.mrb[0].mxu0
        %v1378 = vpop.f32.mrb[0].mxu0
        %1379 = vdwg.mxu0
        %v1381 = vcombine.high %v1375, %v1375
        %v1383 = vunpack.c.l.s4 1966171168
        %v1384 = vunpack.c.0.s8 %v1383
        %v1385 = vlaneseq
        %v1386 = vshrl.u32 %v1385, 7
        %v1387 = vsub.s32 %v1384, %v1386
        %v1388 = vrot.slane %v1375, %v1387
        %v1390 = vunpack.c.l.s4 1966171168
        %v1391 = vunpack.c.0.s8 %v1390
        %v1392 = vlaneseq
        %v1393 = vshrl.u32 %v1392, 7
        %v1394 = vsub.s32 %v1391, %v1393
        %v1395 = vrot.slane %v1381, %v1394
        %v1396 = vcombine.high %v1388, %v1388
        %v1397 = vcombine.high %v1395, %v1395
        %v1399 = vunpack.c.l.s4 1966171168
        %v1400 = vunpack.c.0.s8 %v1399
        %v1401 = vlaneseq
        %v1402 = vshrl.u32 %v1401, 7
        %v1403 = vsub.s32 %v1400, %v1402
        %v1404 = vrot.slane %v1388, %v1403
        %v1406 = vunpack.c.l.s4 1966171168
        %v1407 = vunpack.c.0.s8 %v1406
        %v1408 = vlaneseq
        %v1409 = vshrl.u32 %v1408, 7
        %v1410 = vsub.s32 %v1407, %v1409
        %v1411 = vrot.slane %v1395, %v1410
        %v1413 = vunpack.c.l.s4 1966171168
        %v1414 = vunpack.c.0.s8 %v1413
        %v1415 = vlaneseq
        %v1416 = vshrl.u32 %v1415, 7
        %v1417 = vsub.s32 %v1414, %v1416
        %v1418 = vrot.slane %v1396, %v1417
        %v1420 = vunpack.c.l.s4 1966171168
        %v1421 = vunpack.c.0.s8 %v1420
        %v1422 = vlaneseq
        %v1423 = vshrl.u32 %v1422, 7
        %v1424 = vsub.s32 %v1421, %v1423
        %v1425 = vrot.slane %v1397, %v1424
        %v1426 = vcombine.high %v1404, %v1404
        %v1427 = vcombine.high %v1411, %v1411
        %v1428 = vcombine.high %v1418, %v1418
        %v1429 = vcombine.high %v1425, %v1425
        %vm1438 = vcmask 253952
        %1439 = vst.msk [vmem:[%s379] sm:$0x1] %vm1438, %v1404
        %1440 = vst.msk [vmem:[%s379 + $0x1] sm:$0x1] %vm1438, %v1418
        %1441 = vst.msk [vmem:[%s379 + $0x2] sm:$0x1] %vm1438, %v1426
        %1442 = vst.msk [vmem:[%s379 + $0x3] sm:$0x1] %vm1438, %v1428
        %1443 = vst.msk [vmem:[%s379 + $0x4] sm:$0x1] %vm1438, %v1411
        %1444 = vst.msk [vmem:[%s379 + $0x5] sm:$0x1] %vm1438, %v1425
        %1445 = vst.msk [vmem:[%s379 + $0x6] sm:$0x1] %vm1438, %v1427
        %1446 = vst.msk [vmem:[%s379 + $0x7] sm:$0x1] %vm1438, %v1429
        %s1447 = sand.u32 %s187, 1
        %s1448 = scalar_lea.sflag [#allocation4], %s1447
        %s1449 = sand.u32 %s187, 1
        %s1450 = smul.addr %s1449, 8
        %s1451 = scalar_lea.vmem [#allocation14], %s1450
        // Predicated region
        $region77: #{tpu_custom_call.1} parent=47 // pred_check
          %p1452 = pneg %p197
        $region78: #{tpu_custom_call.1} parent=47 // pred_check_branch
          %1454 = sbr.rel (%p1452) target = $region80
        $region79: #{tpu_custom_call.1} parent=47 // pred_region
          %s1455 = smul.u32 8, %s27
          %s1457 = ssub.s32 128, 128
          %1458 = vsyncadd %s1448, %s1457
          %s1459 = smul.addr %s1455, 16
          %s1460 = scalar_lea.hbm %s7, %s1459
          %s1461 = sshll.u32 %s1451, 4
          %s1462 = int_to_ptr.vmem [resolvable:$true] %s1461
          %1467 = dma.vmem_to_hbm [thread:$0]  %s1462, 128, %s1460, %s1448, 16, 16, 1
        $region80: #{tpu_custom_call.1} parent=47 // pred_fallthru
          _
      $region48: #{tpu_custom_call.1} parent=5 // pred_fallthru
        _
      %p1468 = scmp.le.s32.totalorder 2, %s22
      // Predicated region
      $region81: #{tpu_custom_call.1} parent=5 // pred_check
        %p1469 = pneg %p1468
      $region82: #{tpu_custom_call.1} parent=5 // pred_check_branch
        %1471 = sbr.rel (%p1469) target = $region84
      $region83: #{tpu_custom_call.1} parent=5 // pred_region
        %s1472 = ssub.s32 %s22, 2
        // Predicated region
        $region85: #{tpu_custom_call.1} parent=83 // pred_check
          %p1473 = pneg %p203
        $region86: #{tpu_custom_call.1} parent=83 // pred_check_branch
          %1475 = sbr.rel (%p1473) target = $region88
        $region87: #{tpu_custom_call.1} parent=83 // pred_region
          %s1476 = sand.u32 %s188, 1
          %s1477 = scalar_lea.sflag [#allocation4], %s1476
          %s1478 = sand.u32 %s188, 1
          %s1479 = smul.addr %s1478, 8
          %s1480 = scalar_lea.vmem [#allocation14], %s1479
          %1481 = dma.done %s1477, 128
        $region88: #{tpu_custom_call.1} parent=83 // pred_fallthru
          _
      $region84: #{tpu_custom_call.1} parent=5 // pred_fallthru
        _
    $region6: #{tpu_custom_call.1} parent=1 // loop_footer
      %s26 = sadd.s32 1, %s22
    $region7: #{tpu_custom_call.1} parent=1 // loop_footer_branch
      %21 = sbr.rel target = $region3
    $region8: #{tpu_custom_call.1} parent=1 // loop_exit
      _
    %1482 = vsyncpa [#allocation3], 1
    %s1483 = scalar_lea.sflag [#allocation3], 1
    %1484 = vsyncpa %s1483, 1
    %1485 = vsyncpa [#allocation6], 1
    %1486 = vsyncpa [#allocation9], 1
    %1487 = vsyncpa [#allocation12], 1
    %1488 = vsyncpa [#allocation4], 1
    %s1489 = scalar_lea.sflag [#allocation4], 1
    %1490 = vsyncpa %s1489, 1

// kernel: tpu_custom_call.1
$region0: #{tpu_custom_call.1}
  #allocation0 [shape = 'u32[]', space=smem, size = 0x4, offset = 0x4, fixed_abs, tag = 'smem constant byte address 0x4 - core index']
  #allocation1 [shape = 'u32[144,128]{1,0:T(1,128)}', space=vmem, size = 0x12000, scoped, tag = 'internal scratch']
  %s0 = inlined_call_operand.hbm [shape: bf16[16,8,32], index: 0, kind: input, shape index: {}]
  %s1 = inlined_call_operand.hbm [shape: bf16[32,32], index: 1, kind: input, shape index: {}]
  %s2 = inlined_call_operand.hbm [shape: bf16[32,64], index: 2, kind: input, shape index: {}]
  %s3 = inlined_call_operand.hbm [shape: bf16[32,32], index: 3, kind: input, shape index: {}]
  %s4 = inlined_call_operand.hbm [shape: f32[1,32], index: 4, kind: input, shape index: {}]
  %s5 = inlined_call_operand.hbm [shape: bf16[32,4], index: 5, kind: input, shape index: {}]
  %s6 = inlined_call_operand.hbm [shape: bf16[4,32], index: 6, kind: input, shape index: {}]
  %s7 = inlined_call_operand.hbm [shape: f32[16,1,32], index: 7, kind: output, shape index: {}]
  %s8 = sld [smem:[#allocation0]]
  $region89: #{tpu_custom_call.1} parent=0
    _
  %s10 = ssub.s32 1, %s8
  %s11 = scalar_select 0, %s10, %s8
  $region1: #{tpu_custom_call.1} parent=0
    #allocation2 [shape = 'u8[32768]{0}', space=vmem, size = 0x8000, scoped, tag = 'input window, operand 0']
    #allocation3 [shape = 's32[2]{0}', space=sflag, size = 0x8, scoped, tag = 'scoped memory for tpu_custom_call.1']
    #allocation4 [shape = 's32[2]{0}', space=sflag, size = 0x8, scoped, tag = 'scoped memory for tpu_custom_call.1']
    #allocation5 [shape = 'u8[8192]{0}', space=vmem, size = 0x2000, scoped, tag = 'input window, operand 1, single buffered']
    #allocation6 [shape = 's32[1]{0}', space=sflag, size = 0x4, scoped, tag = 'scoped memory for tpu_custom_call.1']
    #allocation7 [shape = 'u8[8192]{0}', space=vmem, size = 0x2000, scoped, tag = 'input window, operand 2, single buffered']
    #allocation8 [shape = 'u8[8192]{0}', space=vmem, size = 0x2000, scoped, tag = 'input window, operand 3, single buffered']
    #allocation9 [shape = 's32[1]{0}', space=sflag, size = 0x4, scoped, tag = 'scoped memory for tpu_custom_call.1']
    #allocation10 [shape = 'u8[512]{0}', space=vmem, size = 0x400, scoped, tag = 'input window, operand 4, single buffered']
    #allocation11 [shape = 'u8[8192]{0}', space=vmem, size = 0x2000, scoped, tag = 'input window, operand 5, single buffered']
    #allocation12 [shape = 's32[1]{0}', space=sflag, size = 0x4, scoped, tag = 'scoped memory for tpu_custom_call.1']
    #allocation13 [shape = 'u8[1024]{0}', space=vmem, size = 0x400, scoped, tag = 'input window, operand 6, single buffered']
    #allocation14 [shape = 'u8[8192]{0}', space=vmem, size = 0x2000, scoped, tag = 'output window, operand 0']
    %12 = vsyncpa [#allocation3], 0
    %s13 = scalar_lea.sflag [#allocation3], 1
    %14 = vsyncpa %s13, 0
    %15 = vsyncpa [#allocation6], 0
    %16 = vsyncpa [#allocation9], 0
    %17 = vsyncpa [#allocation12], 0
    %18 = vsyncpa [#allocation4], 0
    %s19 = scalar_lea.sflag [#allocation4], 1
    %20 = vsyncpa %s19, 0
    loop: start=0, step=1, limit=4
    $region2: #{tpu_custom_call.1} parent=1 // loop_pre_header
      _
    $region3: #{tpu_custom_call.1} parent=1 // loop_header
      %s22 = sphi 0, %s26
      %p23 = scmp.ge.s32.totalorder %s22, 4
      %s32 = sphi 0, %s34
      %s35 = sphi 0, %s32
      %s36 = sphi 0, %s35
      %s52 = sphi 0, %s36
      %s56 = sphi 0, %s56
      %s58 = sphi 0, %s56
      %s59 = sphi 0, %s58
      %s73 = sphi 0, %s59
      %s77 = sphi 0, %s77
      %s79 = sphi 0, %s77
      %s80 = sphi 0, %s79
      %s94 = sphi 0, %s80
      %s98 = sphi 0, %s98
      %s100 = sphi 0, %s98
      %s101 = sphi 0, %s100
      %s115 = sphi 0, %s101
      %s119 = sphi 0, %s119
      %s121 = sphi 0, %s119
      %s122 = sphi 0, %s121
      %s136 = sphi 0, %s122
      %s140 = sphi 0, %s140
      %s142 = sphi 0, %s140
      %s143 = sphi 0, %s142
      %s157 = sphi 0, %s143
      %s161 = sphi 0, %s161
      %s163 = sphi 0, %s161
      %s164 = sphi 0, %s163
      %s178 = sphi 0, %s164
      %s184 = sphi 0, %s186
      %s187 = sphi 0, %s184
      %s188 = sphi 0, %s187
      %s204 = sphi 0, %s188
    $region4: #{tpu_custom_call.1} parent=1 // loop_header_branch
      %25 = sbr.rel (%p23) target = $region8
    $region5: #{tpu_custom_call.1} parent=1 // loop_body
      %s27 = ssub.s32 %s22, 1
      %s28 = ssub.s32 %s22, 2
      %s29 = sadd.s32 %s22, 1
      %s30 = ssub.s32 %s22, %s29
      %p31 = scmp.eq.s32.totalorder %s30, 0
      %s33 = sadd.s32 %s32, 1
      %s34 = scalar_select %p31, %s32, %s33
      %p37 = pneg %p31
      %p38 = scmp.eq.s32.totalorder %s22, 1
      %p39 = por %p37, %p38
      %p40 = scmp.ne.s32.totalorder %s32, %s35
      %p41 = scmp.eq.s32.totalorder %s22, 0
      %p42 = por %p40, %p41
      %p43 = scmp.ne.s32.totalorder %s32, %s35
      %p44 = scmp.eq.s32.totalorder %s27, 1
      %p45 = por %p43, %p44
      %p46 = scmp.ne.s32.totalorder %s35, %s36
      %p47 = scmp.eq.s32.totalorder %s27, 0
      %p48 = por %p46, %p47
      %p49 = scmp.ne.s32.totalorder %s35, %s36
      %p50 = scmp.eq.s32.totalorder %s28, 1
      %p51 = por %p49, %p50
      %p53 = scmp.ne.s32.totalorder %s36, %s52
      %p54 = scmp.eq.s32.totalorder %s28, 0
      %p55 = por %p53, %p54
      %s57 = sadd.s32 %s56, 1
      %p60 = scmp.eq.s32.totalorder %s22, 1
      %p61 = scmp.ne.s32.totalorder %s56, %s58
      %p62 = scmp.eq.s32.totalorder %s22, 0
      %p63 = por %p61, %p62
      %p64 = scmp.ne.s32.totalorder %s56, %s58
      %p65 = scmp.eq.s32.totalorder %s27, 1
      %p66 = por %p64, %p65
      %p67 = scmp.ne.s32.totalorder %s58, %s59
      %p68 = scmp.eq.s32.totalorder %s27, 0
      %p69 = por %p67, %p68
      %p70 = scmp.ne.s32.totalorder %s58, %s59
      %p71 = scmp.eq.s32.totalorder %s28, 1
      %p72 = por %p70, %p71
      %p74 = scmp.ne.s32.totalorder %s59, %s73
      %p75 = scmp.eq.s32.totalorder %s28, 0
      %p76 = por %p74, %p75
      %s78 = sadd.s32 %s77, 1
      %p81 = scmp.eq.s32.totalorder %s22, 1
      %p82 = scmp.ne.s32.totalorder %s77, %s79
      %p83 = scmp.eq.s32.totalorder %s22, 0
      %p84 = por %p82, %p83
      %p85 = scmp.ne.s32.totalorder %s77, %s79
      %p86 = scmp.eq.s32.totalorder %s27, 1
      %p87 = por %p85, %p86
      %p88 = scmp.ne.s32.totalorder %s79, %s80
      %p89 = scmp.eq.s32.totalorder %s27, 0
      %p90 = por %p88, %p89
      %p91 = scmp.ne.s32.totalorder %s79, %s80
      %p92 = scmp.eq.s32.totalorder %s28, 1
      %p93 = por %p91, %p92
      %p95 = scmp.ne.s32.totalorder %s80, %s94
      %p96 = scmp.eq.s32.totalorder %s28, 0
      %p97 = por %p95, %p96
      %s99 = sadd.s32 %s98, 1
      %p102 = scmp.eq.s32.totalorder %s22, 1
      %p103 = scmp.ne.s32.totalorder %s98, %s100
      %p104 = scmp.eq.s32.totalorder %s22, 0
      %p105 = por %p103, %p104
      %p106 = scmp.ne.s32.totalorder %s98, %s100
      %p107 = scmp.eq.s32.totalorder %s27, 1
      %p108 = por %p106, %p107
      %p109 = scmp.ne.s32.totalorder %s100, %s101
      %p110 = scmp.eq.s32.totalorder %s27, 0
      %p111 = por %p109, %p110
      %p112 = scmp.ne.s32.totalorder %s100, %s101
      %p113 = scmp.eq.s32.totalorder %s28, 1
      %p114 = por %p112, %p113
      %p116 = scmp.ne.s32.totalorder %s101, %s115
      %p117 = scmp.eq.s32.totalorder %s28, 0
      %p118 = por %p116, %p117
      %s120 = sadd.s32 %s119, 1
      %p123 = scmp.eq.s32.totalorder %s22, 1
      %p124 = scmp.ne.s32.totalorder %s119, %s121
      %p125 = scmp.eq.s32.totalorder %s22, 0
      %p126 = por %p124, %p125
      %p127 = scmp.ne.s32.totalorder %s119, %s121
      %p128 = scmp.eq.s32.totalorder %s27, 1
      %p129 = por %p127, %p128
      %p130 = scmp.ne.s32.totalorder %s121, %s122
      %p131 = scmp.eq.s32.totalorder %s27, 0
      %p132 = por %p130, %p131
      %p133 = scmp.ne.s32.totalorder %s121, %s122
      %p134 = scmp.eq.s32.totalorder %s28, 1
      %p135 = por %p133, %p134
      %p137 = scmp.ne.s32.totalorder %s122, %s136
      %p138 = scmp.eq.s32.totalorder %s28, 0
      %p139 = por %p137, %p138
      %s141 = sadd.s32 %s140, 1
      %p144 = scmp.eq.s32.totalorder %s22, 1
      %p145 = scmp.ne.s32.totalorder %s140, %s142
      %p146 = scmp.eq.s32.totalorder %s22, 0
      %p147 = por %p145, %p146
      %p148 = scmp.ne.s32.totalorder %s140, %s142
      %p149 = scmp.eq.s32.totalorder %s27, 1
      %p150 = por %p148, %p149
      %p151 = scmp.ne.s32.totalorder %s142, %s143
      %p152 = scmp.eq.s32.totalorder %s27, 0
      %p153 = por %p151, %p152
      %p154 = scmp.ne.s32.totalorder %s142, %s143
      %p155 = scmp.eq.s32.totalorder %s28, 1
      %p156 = por %p154, %p155
      %p158 = scmp.ne.s32.totalorder %s143, %s157
      %p159 = scmp.eq.s32.totalorder %s28, 0
      %p160 = por %p158, %p159
      %s162 = sadd.s32 %s161, 1
      %p165 = scmp.eq.s32.totalorder %s22, 1
      %p166 = scmp.ne.s32.totalorder %s161, %s163
      %p167 = scmp.eq.s32.totalorder %s22, 0
      %p168 = por %p166, %p167
      %p169 = scmp.ne.s32.totalorder %s161, %s163
      %p170 = scmp.eq.s32.totalorder %s27, 1
      %p171 = por %p169, %p170
      %p172 = scmp.ne.s32.totalorder %s163, %s164
      %p173 = scmp.eq.s32.totalorder %s27, 0
      %p174 = por %p172, %p173
      %p175 = scmp.ne.s32.totalorder %s163, %s164
      %p176 = scmp.eq.s32.totalorder %s28, 1
      %p177 = por %p175, %p176
      %p179 = scmp.ne.s32.totalorder %s164, %s178
      %p180 = scmp.eq.s32.totalorder %s28, 0
      %p181 = por %p179, %p180
      %s182 = ssub.s32 %s22, %s29
      %p183 = scmp.eq.s32.totalorder %s182, 0
      %s185 = sadd.s32 %s184, 1
      %s186 = scalar_select %p183, %s184, %s185
      %p189 = pneg %p183
      %p190 = scmp.eq.s32.totalorder %s22, 1
      %p191 = por %p189, %p190
      %p192 = scmp.ne.s32.totalorder %s184, %s187
      %p193 = scmp.eq.s32.totalorder %s22, 0
      %p194 = por %p192, %p193
      %p195 = scmp.ne.s32.totalorder %s184, %s187
      %p196 = scmp.eq.s32.totalorder %s27, 1
      %p197 = por %p195, %p196
      %p198 = scmp.ne.s32.totalorder %s187, %s188
      %p199 = scmp.eq.s32.totalorder %s27, 0
      %p200 = por %p198, %p199
      %p201 = scmp.ne.s32.totalorder %s187, %s188
      %p202 = scmp.eq.s32.totalorder %s28, 1
      %p203 = por %p201, %p202
      %p205 = scmp.ne.s32.totalorder %s188, %s204
      %p206 = scmp.eq.s32.totalorder %s28, 0
      %p207 = por %p205, %p206
      %p208 = scmp.le.s32.totalorder 1, %s22
      %p209 = scmp.lt.s32.totalorder %s22, 3
      %p210 = pnand %p208, %p209
      %p211 = pneg %p210
      // Predicated region
      $region9: #{tpu_custom_call.1} parent=5 // pred_check
        _
      $region10: #{tpu_custom_call.1} parent=5 // pred_check_branch
        %213 = sbr.rel (%p210) target = $region12
      $region11: #{tpu_custom_call.1} parent=5 // pred_region
        %s214 = ssub.s32 %s22, 1
        // Predicated region
        $region13: #{tpu_custom_call.1} parent=11 // pred_check
          %p215 = pneg %p69
        $region14: #{tpu_custom_call.1} parent=11 // pred_check_branch
          %217 = sbr.rel (%p215) target = $region16
        $region15: #{tpu_custom_call.1} parent=11 // pred_region
          %s219 = ssub.s32 256, 256
          %220 = vsyncadd [#allocation6], %s219
          %s221 = sshll.u32 [#allocation5], 4
          %s222 = int_to_ptr.vmem [resolvable:$true] %s221
          %227 = dma.hbm_to_vmem [thread:$0]  %s1, 256, %s222, [#allocation6], 64, 64, 4
        $region16: #{tpu_custom_call.1} parent=11 // pred_fallthru
          _
        // Predicated region
        $region17: #{tpu_custom_call.1} parent=11 // pred_check
          %p228 = pneg %p90
        $region18: #{tpu_custom_call.1} parent=11 // pred_check_branch
          %230 = sbr.rel (%p228) target = $region20
        $region19: #{tpu_custom_call.1} parent=11 // pred_region
          %s232 = ssub.s32 256, 256
          %233 = vsyncadd [#allocation6], %s232
          %s234 = sshll.u32 [#allocation7], 4
          %s235 = int_to_ptr.vmem [resolvable:$true] %s234
          %240 = dma.hbm_to_vmem [thread:$0]  %s2, 256, %s235, [#allocation6], 64, 64, 4
        $region20: #{tpu_custom_call.1} parent=11 // pred_fallthru
          _
        // Predicated region
        $region21: #{tpu_custom_call.1} parent=11 // pred_check
          %p241 = pneg %p111
        $region22: #{tpu_custom_call.1} parent=11 // pred_check_branch
          %243 = sbr.rel (%p241) target = $region24
        $region23: #{tpu_custom_call.1} parent=11 // pred_region
          %s245 = ssub.s32 256, 256
          %246 = vsyncadd [#allocation9], %s245
          %s247 = sshll.u32 [#allocation8], 4
          %s248 = int_to_ptr.vmem [resolvable:$true] %s247
          %253 = dma.hbm_to_vmem [thread:$0]  %s3, 256, %s248, [#allocation9], 64, 64, 4
        $region24: #{tpu_custom_call.1} parent=11 // pred_fallthru
          _
        // Predicated region
        $region25: #{tpu_custom_call.1} parent=11 // pred_check
          %p254 = pneg %p132
        $region26: #{tpu_custom_call.1} parent=11 // pred_check_branch
          %256 = sbr.rel (%p254) target = $region28
        $region27: #{tpu_custom_call.1} parent=11 // pred_region
          %s258 = ssub.s32 16, 16
          %259 = vsyncadd [#allocation9], %s258
          %s261 = sshll.u32 [#allocation10], 4
          %s262 = int_to_ptr.vmem [resolvable:$true] %s261
          %264 = dma.hbm_to_vmem [thread:$0]  %s4, 16, %s262, [#allocation9]
        $region28: #{tpu_custom_call.1} parent=11 // pred_fallthru
          _
        // Predicated region
        $region29: #{tpu_custom_call.1} parent=11 // pred_check
          %p265 = pneg %p153
        $region30: #{tpu_custom_call.1} parent=11 // pred_check_branch
          %267 = sbr.rel (%p265) target = $region32
        $region31: #{tpu_custom_call.1} parent=11 // pred_region
          %s269 = ssub.s32 256, 256
          %270 = vsyncadd [#allocation12], %s269
          %s271 = sshll.u32 [#allocation11], 4
          %s272 = int_to_ptr.vmem [resolvable:$true] %s271
          %277 = dma.hbm_to_vmem [thread:$0]  %s5, 256, %s272, [#allocation12], 64, 64, 4
        $region32: #{tpu_custom_call.1} parent=11 // pred_fallthru
          _
        // Predicated region
        $region33: #{tpu_custom_call.1} parent=11 // pred_check
          %p278 = pneg %p174
        $region34: #{tpu_custom_call.1} parent=11 // pred_check_branch
          %280 = sbr.rel (%p278) target = $region36
        $region35: #{tpu_custom_call.1} parent=11 // pred_region
          %s282 = ssub.s32 32, 32
          %283 = vsyncadd [#allocation12], %s282
          %s285 = sshll.u32 [#allocation13], 4
          %s286 = int_to_ptr.vmem [resolvable:$true] %s285
          %288 = dma.hbm_to_vmem [thread:$0]  %s6, 32, %s286, [#allocation12]
        $region36: #{tpu_custom_call.1} parent=11 // pred_fallthru
          _
      $region12: #{tpu_custom_call.1} parent=5 // pred_fallthru
        _
      %p289 = scmp.lt.s32.totalorder %s22, 2
      // Predicated region
      $region37: #{tpu_custom_call.1} parent=5 // pred_check
        %p290 = pneg %p289
      $region38: #{tpu_custom_call.1} parent=5 // pred_check_branch
        %292 = sbr.rel (%p290) target = $region40
      $region39: #{tpu_custom_call.1} parent=5 // pred_region
        // Predicated region
        $region41: #{tpu_custom_call.1} parent=39 // pred_check
          %p293 = pneg %p42
        $region42: #{tpu_custom_call.1} parent=39 // pred_check_branch
          %295 = sbr.rel (%p293) target = $region44
        $region43: #{tpu_custom_call.1} parent=39 // pred_region
          %s296 = sand.u32 %s32, 1
          %s297 = scalar_lea.sflag [#allocation3], %s296
          %s298 = sand.u32 %s32, 1
          %s299 = smul.addr %s298, 32
          %s300 = scalar_lea.vmem [#allocation2], %s299
          %s301 = smul.u32 8, %s22
          %s303 = ssub.s32 512, 512
          %304 = vsyncadd %s297, %s303
          %s305 = smul.addr %s301, 64
          %s306 = scalar_lea.hbm %s0, %s305
          %s307 = sshll.u32 %s300, 4
          %s308 = int_to_ptr.vmem [resolvable:$true] %s307
          %313 = dma.hbm_to_vmem [thread:$0]  %s306, 512, %s308, %s297, 64, 64, 4
        $region44: #{tpu_custom_call.1} parent=39 // pred_fallthru
          _
      $region40: #{tpu_custom_call.1} parent=5 // pred_fallthru
        _
      %p314 = scmp.le.s32.totalorder 1, %s22
      %p315 = scmp.lt.s32.totalorder %s22, 3
      %p316 = pnand %p314, %p315
      %p317 = pneg %p316
      // Predicated region
      $region45: #{tpu_custom_call.1} parent=5 // pred_check
        _
      $region46: #{tpu_custom_call.1} parent=5 // pred_check_branch
        %319 = sbr.rel (%p316) target = $region48
      $region47: #{tpu_custom_call.1} parent=5 // pred_region
        %s320 = ssub.s32 %s22, 1
        %s321 = sand.u32 %s35, 1
        %s322 = scalar_lea.sflag [#allocation3], %s321
        %s323 = sand.u32 %s35, 1
        %s324 = smul.addr %s323, 32
        %s325 = scalar_lea.vmem [#allocation2], %s324
        // Predicated region
        $region49: #{tpu_custom_call.1} parent=47 // pred_check
          %p326 = pneg %p48
        $region50: #{tpu_custom_call.1} parent=47 // pred_check_branch
          %328 = sbr.rel (%p326) target = $region52
        $region51: #{tpu_custom_call.1} parent=47 // pred_region
          %329 = dma.done %s322, 512
        $region52: #{tpu_custom_call.1} parent=47 // pred_fallthru
          _
        // Predicated region
        $region53: #{tpu_custom_call.1} parent=47 // pred_check
          %p330 = pneg %p69
        $region54: #{tpu_custom_call.1} parent=47 // pred_check_branch
          %332 = sbr.rel (%p330) target = $region56
        $region55: #{tpu_custom_call.1} parent=47 // pred_region
          %333 = dma.done [#allocation6], 256
        $region56: #{tpu_custom_call.1} parent=47 // pred_fallthru
          _
        // Predicated region
        $region57: #{tpu_custom_call.1} parent=47 // pred_check
          %p334 = pneg %p90
        $region58: #{tpu_custom_call.1} parent=47 // pred_check_branch
          %336 = sbr.rel (%p334) target = $region60
        $region59: #{tpu_custom_call.1} parent=47 // pred_region
          %337 = dma.done [#allocation6], 256
        $region60: #{tpu_custom_call.1} parent=47 // pred_fallthru
          _
        // Predicated region
        $region61: #{tpu_custom_call.1} parent=47 // pred_check
          %p338 = pneg %p111
        $region62: #{tpu_custom_call.1} parent=47 // pred_check_branch
          %340 = sbr.rel (%p338) target = $region64
        $region63: #{tpu_custom_call.1} parent=47 // pred_region
          %341 = dma.done [#allocation9], 256
        $region64: #{tpu_custom_call.1} parent=47 // pred_fallthru
          _
        // Predicated region
        $region65: #{tpu_custom_call.1} parent=47 // pred_check
          %p342 = pneg %p132
        $region66: #{tpu_custom_call.1} parent=47 // pred_check_branch
          %344 = sbr.rel (%p342) target = $region68
        $region67: #{tpu_custom_call.1} parent=47 // pred_region
          %345 = dma.done [#allocation9], 16
        $region68: #{tpu_custom_call.1} parent=47 // pred_fallthru
          _
        // Predicated region
        $region69: #{tpu_custom_call.1} parent=47 // pred_check
          %p346 = pneg %p153
        $region70: #{tpu_custom_call.1} parent=47 // pred_check_branch
          %348 = sbr.rel (%p346) target = $region72
        $region71: #{tpu_custom_call.1} parent=47 // pred_region
          %349 = dma.done [#allocation12], 256
        $region72: #{tpu_custom_call.1} parent=47 // pred_fallthru
          _
        // Predicated region
        $region73: #{tpu_custom_call.1} parent=47 // pred_check
          %p350 = pneg %p174
        $region74: #{tpu_custom_call.1} parent=47 // pred_check_branch
          %352 = sbr.rel (%p350) target = $region76
        $region75: #{tpu_custom_call.1} parent=47 // pred_region
          %353 = dma.done [#allocation12], 32
        $region76: #{tpu_custom_call.1} parent=47 // pred_fallthru
          _
        %s354 = sand.u32 %s35, 1
        %s355 = scalar_lea.sflag [#allocation3], %s354
        %s356 = sand.u32 %s35, 1
        %s357 = smul.addr %s356, 32
        %s358 = scalar_lea.vmem [#allocation2], %s357
        %p359 = pneg %p48
        %p360 = pneg %p45
        %p361 = pneg %p69
        %p362 = pneg %p66
        %p363 = pneg %p90
        %p364 = pneg %p87
        %p365 = pneg %p111
        %p366 = pneg %p108
        %p367 = pneg %p132
        %p368 = pneg %p129
        %p369 = pneg %p153
        %p370 = pneg %p150
        %p371 = pneg %p174
        %p372 = pneg %p171
        %p373 = pneg %p200
        %p374 = pneg %p197
        %s375 = sand.u32 %s187, 1
        %s376 = scalar_lea.sflag [#allocation4], %s375
        %s377 = sand.u32 %s187, 1
        %s378 = smul.addr %s377, 8
        %s379 = scalar_lea.vmem [#allocation14], %s378
        %s380 = smul.u32 8, %s27
        %s381 = smul.u32 8, %s27
        %v383 = vld [vmem:[%s325] sm:$0xf]
        %v384 = vld [vmem:[%s325 + $0x4] sm:$0xf]
        %v385 = vld [vmem:[%s325 + $0x8] sm:$0xf]
        %v386 = vld [vmem:[%s325 + $0xc] sm:$0xf]
        %v387 = vld [vmem:[%s325 + $0x10] sm:$0xf]
        %v388 = vld [vmem:[%s325 + $0x14] sm:$0xf]
        %v389 = vld [vmem:[%s325 + $0x18] sm:$0xf]
        %v390 = vld [vmem:[%s325 + $0x1c] sm:$0xf]
        %v391 = vld [vmem:[#allocation5] sm:$0xf]
        %v392 = vld [vmem:[#allocation5 + $0x4] sm:$0xf]
        %v393 = vld [vmem:[#allocation5 + $0x8] sm:$0xf]
        %v394 = vld [vmem:[#allocation5 + $0xc] sm:$0xf]
        %v403 = vunpack.c.l.b16 %v383
        %v404 = vunpack.c.l.b16 %v384
        %v405 = vunpack.c.l.b16 %v385
        %v406 = vunpack.c.l.b16 %v386
        %v407 = vunpack.c.l.b16 %v387
        %v408 = vunpack.c.l.b16 %v388
        %v409 = vunpack.c.l.b16 %v389
        %v410 = vunpack.c.l.b16 %v390
        %v411 = vpack.c.b16 %v403, %v403
        %v412 = vpack.c.b16 %v404, %v404
        %v413 = vpack.c.b16 %v405, %v405
        %v414 = vpack.c.b16 %v406, %v406
        %v415 = vpack.c.b16 %v407, %v407
        %v416 = vpack.c.b16 %v408, %v408
        %v417 = vpack.c.b16 %v409, %v409
        %v418 = vpack.c.b16 %v410, %v410
        %v419 = vunpack.c.l.b16 %v411
        %v420 = vunpack.c.l.b16 %v412
        %v421 = vunpack.c.l.b16 %v413
        %v422 = vunpack.c.l.b16 %v414
        %v423 = vunpack.c.l.b16 %v415
        %v424 = vunpack.c.l.b16 %v416
        %v425 = vunpack.c.l.b16 %v417
        %v426 = vunpack.c.l.b16 %v418
        %v427 = vrot.slane %v420, 7
        %vm428 = vcmask 1041409
        %v429 = vsel %vm428, %v427, %v419
        %v430 = vrot.slane %v421, 6
        %vm431 = vcmask 1042434
        %v432 = vsel %vm431, %v430, %v429
        %v433 = vrot.slane %v422, 5
        %vm434 = vcmask 1043459
        %v435 = vsel %vm434, %v433, %v432
        %v436 = vrot.slane %v423, 4
        %vm437 = vcmask 1044484
        %v438 = vsel %vm437, %v436, %v435
        %v439 = vrot.slane %v424, 3
        %vm440 = vcmask 1045509
        %v441 = vsel %vm440, %v439, %v438
        %v442 = vrot.slane %v425, 2
        %vm443 = vcmask 1046534
        %v444 = vsel %vm443, %v442, %v441
        %v445 = vrot.slane %v426, 1
        %vm446 = vcmask 1047559
        %v447 = vsel %vm446, %v445, %v444
        %v448 = vpack.c.b16 %v447, %v447
        %v453 = vunpack.c.l.b16 %v391
        %v454 = vunpack.c.l.b16 %v392
        %v455 = vunpack.c.l.b16 %v393
        %v456 = vunpack.c.l.b16 %v394
        %v457 = vpack.c.b16 %v454, %v453
        %v458 = vpack.c.b16 %v456, %v455
        %vm461 = vcmask 261120
        %v463 = vsel %vm461, %v448, 0
        %465 = vmatprep.subr.bf16.mxu0 0
        %466 = vmatpush1.bf16.msra.mxu0 %v457
        %467 = vmatprep.subr.bf16.mxu0 0
        %468 = vmatpush1.bf16.msra.mxu0 %v458
        %469 = vmatprep.subr.bf16.mxu0 0
        %470 = vmatpush1.bf16.msra.mxu0 0
        %471 = vmatprep.subr.bf16.mxu0 0
        %472 = vmatpush1.bf16.msra.mxu0 0
        %473 = vmatprep.subr.bf16.mxu0 0
        %474 = vmatpush1.bf16.msra.mxu0 0
        %475 = vmatprep.subr.bf16.mxu0 0
        %476 = vmatpush1.bf16.msra.mxu0 0
        %477 = vmatprep.subr.bf16.mxu0 0
        %478 = vmatpush1.bf16.msra.mxu0 0
        %479 = vmatprep.subr.bf16.mxu0 0
        %480 = vmatpush1.bf16.msra.mxu0 0
        %481 = vmatprep.subr.bf16.mxu0 0
        %482 = vmatpush1.bf16.msra.mxu0 0
        %483 = vmatprep.subr.bf16.mxu0 0
        %484 = vmatpush1.bf16.msra.mxu0 0
        %485 = vmatprep.subr.bf16.mxu0 0
        %486 = vmatpush1.bf16.msra.mxu0 0
        %487 = vmatprep.subr.bf16.mxu0 0
        %488 = vmatpush1.bf16.msra.mxu0 0
        %489 = vmatprep.subr.bf16.mxu0 0
        %490 = vmatpush1.bf16.msra.mxu0 0
        %491 = vmatprep.subr.bf16.mxu0 0
        %492 = vmatpush1.bf16.msra.mxu0 0
        %493 = vmatprep.subr.bf16.mxu0 0
        %494 = vmatpush1.bf16.msra.mxu0 0
        %495 = vmatprep.subr.bf16.mxu0 0
        %496 = vmatpush1.bf16.msra.mxu0 0
        %497 = vmatprep.mubr.bf16.mxu0 0
        %498 = vmatmul.mubr.bf16.gmra.mrb[0].mxu0 %v463
        %v499 = vpop.f32.mrb[0].mxu0
        %v500 = vadd.f32 0.0, %v499
        %v501 = vpop.f32.mrb[0].mxu0
        %v502 = vpop.f32.mrb[0].mxu0
        %v503 = vpop.f32.mrb[0].mxu0
        %504 = vdwg.mxu0
        %v505 = vld [vmem:[#allocation7] sm:$0xf]
        %v506 = vld [vmem:[#allocation7 + $0x4] sm:$0xf]
        %v507 = vld [vmem:[#allocation7 + $0x8] sm:$0xf]
        %v508 = vld [vmem:[#allocation7 + $0xc] sm:$0xf]
        %v509 = vpack.c.b16 %v404, %v403
        %v510 = vpack.c.b16 %v406, %v405
        %v511 = vpack.c.b16 %v408, %v407
        %v512 = vpack.c.b16 %v410, %v409
        %v517 = vunpack.c.l.b16 %v505
        %v518 = vunpack.c.l.b16 %v506
        %v519 = vunpack.c.l.b16 %v507
        %v520 = vunpack.c.l.b16 %v508
        %v521 = vpack.c.b16 %v518, %v517
        %v522 = vpack.c.b16 %v520, %v519
        %v526 = vsel %vm461, %v509, 0
        %v529 = vsel %vm461, %v510, 0
        %v532 = vsel %vm461, %v511, 0
        %v535 = vsel %vm461, %v512, 0
        %537 = vmatprep.subr.bf16.mxu0 0
        %538 = vmatpush1.bf16.msra.mxu0 %v521
        %539 = vmatprep.subr.bf16.mxu0 0
        %540 = vmatpush1.bf16.msra.mxu0 %v522
        %541 = vmatprep.subr.bf16.mxu0 0
        %542 = vmatpush1.bf16.msra.mxu0 0
        %543 = vmatprep.subr.bf16.mxu0 0
        %544 = vmatpush1.bf16.msra.mxu0 0
        %545 = vmatprep.subr.bf16.mxu0 0
        %546 = vmatpush1.bf16.msra.mxu0 0
        %547 = vmatprep.subr.bf16.mxu0 0
        %548 = vmatpush1.bf16.msra.mxu0 0
        %549 = vmatprep.subr.bf16.mxu0 0
        %550 = vmatpush1.bf16.msra.mxu0 0
        %551 = vmatprep.subr.bf16.mxu0 0
        %552 = vmatpush1.bf16.msra.mxu0 0
        %553 = vmatprep.subr.bf16.mxu0 0
        %554 = vmatpush1.bf16.msra.mxu0 0
        %555 = vmatprep.subr.bf16.mxu0 0
        %556 = vmatpush1.bf16.msra.mxu0 0
        %557 = vmatprep.subr.bf16.mxu0 0
        %558 = vmatpush1.bf16.msra.mxu0 0
        %559 = vmatprep.subr.bf16.mxu0 0
        %560 = vmatpush1.bf16.msra.mxu0 0
        %561 = vmatprep.subr.bf16.mxu0 0
        %562 = vmatpush1.bf16.msra.mxu0 0
        %563 = vmatprep.subr.bf16.mxu0 0
        %564 = vmatpush1.bf16.msra.mxu0 0
        %565 = vmatprep.subr.bf16.mxu0 0
        %566 = vmatpush1.bf16.msra.mxu0 0
        %567 = vmatprep.subr.bf16.mxu0 0
        %568 = vmatpush1.bf16.msra.mxu0 0
        %569 = vmatprep.mubr.bf16.mxu0 0
        %570 = vmatmul.mubr.bf16.gmra.mrb[0].mxu0 %v526
        %v571 = vpop.f32.mrb[0].mxu0
        %v572 = vadd.f32 0.0, %v571
        %v573 = vpop.f32.mrb[0].mxu0
        %v574 = vpop.f32.mrb[0].mxu0
        %v575 = vadd.f32 0.0, %v574
        %v576 = vpop.f32.mrb[0].mxu0
        %577 = vmatprep.mubr.bf16.mxu0 0
        %578 = vmatmul.mubr.bf16.gmra.mrb[0].mxu0 %v529
        %v579 = vpop.f32.mrb[0].mxu0
        %v580 = vadd.f32 0.0, %v579
        %v581 = vpop.f32.mrb[0].mxu0
        %v582 = vpop.f32.mrb[0].mxu0
        %v583 = vadd.f32 0.0, %v582
        %v584 = vpop.f32.mrb[0].mxu0
        %585 = vmatprep.mubr.bf16.mxu0 0
        %586 = vmatmul.mubr.bf16.gmra.mrb[0].mxu0 %v532
        %v587 = vpop.f32.mrb[0].mxu0
        %v588 = vadd.f32 0.0, %v587
        %v589 = vpop.f32.mrb[0].mxu0
        %v590 = vpop.f32.mrb[0].mxu0
        %v591 = vadd.f32 0.0, %v590
        %v592 = vpop.f32.mrb[0].mxu0
        %593 = vmatprep.mubr.bf16.mxu0 0
        %594 = vmatmul.mubr.bf16.gmra.mrb[0].mxu0 %v535
        %v595 = vpop.f32.mrb[0].mxu0
        %v596 = vadd.f32 0.0, %v595
        %v597 = vpop.f32.mrb[0].mxu0
        %v598 = vpop.f32.mrb[0].mxu0
        %v599 = vadd.f32 0.0, %v598
        %v600 = vpop.f32.mrb[0].mxu0
        %601 = vdwg.mxu0
        %v602 = vld [vmem:[#allocation11] sm:$0xf]
        %v603 = vld [vmem:[#allocation11 + $0x4] sm:$0xf]
        %v604 = vld [vmem:[#allocation11 + $0x8] sm:$0xf]
        %v605 = vld [vmem:[#allocation11 + $0xc] sm:$0xf]
        %v606 = vld [vmem:[#allocation13] sm:$0x3]
        %v608 = vcombine.high %v500, %v500
        %v610 = vunpack.c.l.s4 1966171168
        %v611 = vunpack.c.0.s8 %v610
        %v612 = vlaneseq
        %v613 = vshrl.u32 %v612, 7
        %v614 = vsub.s32 %v611, %v613
        %v615 = vrot.slane %v500, %v614
        %v617 = vunpack.c.l.s4 1966171168
        %v618 = vunpack.c.0.s8 %v617
        %v619 = vlaneseq
        %v620 = vshrl.u32 %v619, 7
        %v621 = vsub.s32 %v618, %v620
        %v622 = vrot.slane %v608, %v621
        %v623 = vcombine.high %v615, %v615
        %v624 = vcombine.high %v622, %v622
        %v626 = vunpack.c.l.s4 1966171168
        %v627 = vunpack.c.0.s8 %v626
        %v628 = vlaneseq
        %v629 = vshrl.u32 %v628, 7
        %v630 = vsub.s32 %v627, %v629
        %v631 = vrot.slane %v615, %v630
        %v633 = vunpack.c.l.s4 1966171168
        %v634 = vunpack.c.0.s8 %v633
        %v635 = vlaneseq
        %v636 = vshrl.u32 %v635, 7
        %v637 = vsub.s32 %v634, %v636
        %v638 = vrot.slane %v622, %v637
        %v640 = vunpack.c.l.s4 1966171168
        %v641 = vunpack.c.0.s8 %v640
        %v642 = vlaneseq
        %v643 = vshrl.u32 %v642, 7
        %v644 = vsub.s32 %v641, %v643
        %v645 = vrot.slane %v623, %v644
        %v647 = vunpack.c.l.s4 1966171168
        %v648 = vunpack.c.0.s8 %v647
        %v649 = vlaneseq
        %v650 = vshrl.u32 %v649, 7
        %v651 = vsub.s32 %v648, %v650
        %v652 = vrot.slane %v624, %v651
        %v653 = vcombine.high %v631, %v631
        %v654 = vcombine.high %v638, %v638
        %v655 = vcombine.high %v645, %v645
        %v656 = vcombine.high %v652, %v652
        %v657 = vlaneseq
        %v658 = vshrl.u32 %v657, 7
        %v659 = vsub.s32 0, %v658
        %v660 = vrot.slane %v631, %v659
        %v661 = vlaneseq
        %v662 = vshrl.u32 %v661, 7
        %v663 = vsub.s32 0, %v662
        %v664 = vrot.slane %v645, %v663
        %v665 = vlaneseq
        %v666 = vshrl.u32 %v665, 7
        %v667 = vsub.s32 0, %v666
        %v668 = vrot.slane %v653, %v667
        %v669 = vlaneseq
        %v670 = vshrl.u32 %v669, 7
        %v671 = vsub.s32 0, %v670
        %v672 = vrot.slane %v655, %v671
        %v673 = vlaneseq
        %v674 = vshrl.u32 %v673, 7
        %v675 = vsub.s32 0, %v674
        %v676 = vrot.slane %v638, %v675
        %v677 = vlaneseq
        %v678 = vshrl.u32 %v677, 7
        %v679 = vsub.s32 0, %v678
        %v680 = vrot.slane %v652, %v679
        %v681 = vlaneseq
        %v682 = vshrl.u32 %v681, 7
        %v683 = vsub.s32 0, %v682
        %v684 = vrot.slane %v654, %v683
        %v685 = vlaneseq
        %v686 = vshrl.u32 %v685, 7
        %v687 = vsub.s32 0, %v686
        %v688 = vrot.slane %v656, %v687
        %v697 = vmul.f32 %v660, %v572
        %v698 = vmul.f32 %v664, %v575
        %v699 = vmul.f32 %v668, %v580
        %v700 = vmul.f32 %v672, %v583
        %v701 = vmul.f32 %v676, %v588
        %v702 = vmul.f32 %v680, %v591
        %v703 = vmul.f32 %v684, %v596
        %v704 = vmul.f32 %v688, %v599
        %v705 = vpack.c.bf16 %v697, %v697
        %v706 = vpack.c.bf16 %v698, %v698
        %v707 = vpack.c.bf16 %v699, %v699
        %v708 = vpack.c.bf16 %v700, %v700
        %v709 = vpack.c.bf16 %v701, %v701
        %v710 = vpack.c.bf16 %v702, %v702
        %v711 = vpack.c.bf16 %v703, %v703
        %v712 = vpack.c.bf16 %v704, %v704
        %v721 = vunpack.c.l.b16 %v705
        %v722 = vunpack.c.l.b16 %v706
        %v723 = vunpack.c.l.b16 %v707
        %v724 = vunpack.c.l.b16 %v708
        %v725 = vunpack.c.l.b16 %v709
        %v726 = vunpack.c.l.b16 %v710
        %v727 = vunpack.c.l.b16 %v711
        %v728 = vunpack.c.l.b16 %v712
        %v729 = vpack.c.b16 %v722, %v721
        %v730 = vpack.c.b16 %v724, %v723
        %v731 = vpack.c.b16 %v726, %v725
        %v732 = vpack.c.b16 %v728, %v727
        %v737 = vunpack.c.l.b16 %v602
        %v738 = vunpack.c.l.b16 %v603
        %v739 = vunpack.c.l.b16 %v604
        %v740 = vunpack.c.l.b16 %v605
        %v741 = vpack.c.b16 %v738, %v737
        %v742 = vpack.c.b16 %v740, %v739
        %v746 = vsel %vm461, %v729, 0
        %v749 = vsel %vm461, %v730, 0
        %v752 = vsel %vm461, %v731, 0
        %v755 = vsel %vm461, %v732, 0
        %757 = vmatprep.subr.bf16.mxu0 0
        %758 = vmatpush1.bf16.msra.mxu0 %v741
        %759 = vmatprep.subr.bf16.mxu0 0
        %760 = vmatpush1.bf16.msra.mxu0 %v742
        %761 = vmatprep.subr.bf16.mxu0 0
        %762 = vmatpush1.bf16.msra.mxu0 0
        %763 = vmatprep.subr.bf16.mxu0 0
        %764 = vmatpush1.bf16.msra.mxu0 0
        %765 = vmatprep.subr.bf16.mxu0 0
        %766 = vmatpush1.bf16.msra.mxu0 0
        %767 = vmatprep.subr.bf16.mxu0 0
        %768 = vmatpush1.bf16.msra.mxu0 0
        %769 = vmatprep.subr.bf16.mxu0 0
        %770 = vmatpush1.bf16.msra.mxu0 0
        %771 = vmatprep.subr.bf16.mxu0 0
        %772 = vmatpush1.bf16.msra.mxu0 0
        %773 = vmatprep.subr.bf16.mxu0 0
        %774 = vmatpush1.bf16.msra.mxu0 0
        %775 = vmatprep.subr.bf16.mxu0 0
        %776 = vmatpush1.bf16.msra.mxu0 0
        %777 = vmatprep.subr.bf16.mxu0 0
        %778 = vmatpush1.bf16.msra.mxu0 0
        %779 = vmatprep.subr.bf16.mxu0 0
        %780 = vmatpush1.bf16.msra.mxu0 0
        %781 = vmatprep.subr.bf16.mxu0 0
        %782 = vmatpush1.bf16.msra.mxu0 0
        %783 = vmatprep.subr.bf16.mxu0 0
        %784 = vmatpush1.bf16.msra.mxu0 0
        %785 = vmatprep.subr.bf16.mxu0 0
        %786 = vmatpush1.bf16.msra.mxu0 0
        %787 = vmatprep.subr.bf16.mxu0 0
        %788 = vmatpush1.bf16.msra.mxu0 0
        %789 = vmatprep.mubr.bf16.mxu0 0
        %790 = vmatmul.mubr.bf16.gmra.mrb[0].mxu0 %v746
        %v791 = vpop.f32.mrb[0].mxu0
        %v792 = vadd.f32 0.0, %v791
        %v793 = vpop.f32.mrb[0].mxu0
        %v794 = vpop.f32.mrb[0].mxu0
        %v795 = vadd.f32 0.0, %v794
        %v796 = vpop.f32.mrb[0].mxu0
        %797 = vmatprep.mubr.bf16.mxu0 0
        %798 = vmatmul.mubr.bf16.gmra.mrb[0].mxu0 %v749
        %v799 = vpop.f32.mrb[0].mxu0
        %v800 = vadd.f32 0.0, %v799
        %v801 = vpop.f32.mrb[0].mxu0
        %v802 = vpop.f32.mrb[0].mxu0
        %v803 = vadd.f32 0.0, %v802
        %v804 = vpop.f32.mrb[0].mxu0
        %805 = vmatprep.mubr.bf16.mxu0 0
        %806 = vmatmul.mubr.bf16.gmra.mrb[0].mxu0 %v752
        %v807 = vpop.f32.mrb[0].mxu0
        %v808 = vadd.f32 0.0, %v807
        %v809 = vpop.f32.mrb[0].mxu0
        %v810 = vpop.f32.mrb[0].mxu0
        %v811 = vadd.f32 0.0, %v810
        %v812 = vpop.f32.mrb[0].mxu0
        %813 = vmatprep.mubr.bf16.mxu0 0
        %814 = vmatmul.mubr.bf16.gmra.mrb[0].mxu0 %v755
        %v815 = vpop.f32.mrb[0].mxu0
        %v816 = vadd.f32 0.0, %v815
        %v817 = vpop.f32.mrb[0].mxu0
        %v818 = vpop.f32.mrb[0].mxu0
        %v819 = vadd.f32 0.0, %v818
        %v820 = vpop.f32.mrb[0].mxu0
        %821 = vdwg.mxu0
        %v822 = vlaneseq
        %v823 = vshrl.u32 %v822, 7
        %vm824 = vcmp.eq.s32.totalorder %v823, 0
        %v825 = vsel %vm824, -1e+30, %v792
        %v826 = vsel %vm824, -1e+30, %v795
        %v827 = vsel %vm824, -1e+30, %v800
        %v828 = vsel %vm824, -1e+30, %v803
        %v829 = vsel %vm824, -1e+30, %v808
        %v830 = vsel %vm824, -1e+30, %v811
        %v831 = vsel %vm824, -1e+30, %v816
        %v832 = vsel %vm824, -1e+30, %v819
        %vm833 = vcmask 31744
        %v834 = vsel %vm833, %v825, -inf
        %v835 = vrot.slane %v834, 4
        %v836 = vmax.f32 %v834, %v835
        %v837 = vrot.slane %v836, 2
        %v838 = vmax.f32 %v836, %v837
        %v839 = vrot.slane %v838, 1
        %v840 = vmax.f32 %v838, %v839
        %v841 = vsel %vm833, %v826, -inf
        %v842 = vrot.slane %v841, 4
        %v843 = vmax.f32 %v841, %v842
        %v844 = vrot.slane %v843, 2
        %v845 = vmax.f32 %v843, %v844
        %v846 = vrot.slane %v845, 1
        %v847 = vmax.f32 %v845, %v846
        %v848 = vsel %vm833, %v827, -inf
        %v849 = vrot.slane %v848, 4
        %v850 = vmax.f32 %v848, %v849
        %v851 = vrot.slane %v850, 2
        %v852 = vmax.f32 %v850, %v851
        %v853 = vrot.slane %v852, 1
        %v854 = vmax.f32 %v852, %v853
        %v855 = vsel %vm833, %v828, -inf
        %v856 = vrot.slane %v855, 4
        %v857 = vmax.f32 %v855, %v856
        %v858 = vrot.slane %v857, 2
        %v859 = vmax.f32 %v857, %v858
        %v860 = vrot.slane %v859, 1
        %v861 = vmax.f32 %v859, %v860
        %v862 = vsel %vm833, %v829, -inf
        %v863 = vrot.slane %v862, 4
        %v864 = vmax.f32 %v862, %v863
        %v865 = vrot.slane %v864, 2
        %v866 = vmax.f32 %v864, %v865
        %v867 = vrot.slane %v866, 1
        %v868 = vmax.f32 %v866, %v867
        %v869 = vsel %vm833, %v830, -inf
        %v870 = vrot.slane %v869, 4
        %v871 = vmax.f32 %v869, %v870
        %v872 = vrot.slane %v871, 2
        %v873 = vmax.f32 %v871, %v872
        %v874 = vrot.slane %v873, 1
        %v875 = vmax.f32 %v873, %v874
        %v876 = vsel %vm833, %v831, -inf
        %v877 = vrot.slane %v876, 4
        %v878 = vmax.f32 %v876, %v877
        %v879 = vrot.slane %v878, 2
        %v880 = vmax.f32 %v878, %v879
        %v881 = vrot.slane %v880, 1
        %v882 = vmax.f32 %v880, %v881
        %v883 = vsel %vm833, %v832, -inf
        %v884 = vrot.slane %v883, 4
        %v885 = vmax.f32 %v883, %v884
        %v886 = vrot.slane %v885, 2
        %v887 = vmax.f32 %v885, %v886
        %v888 = vrot.slane %v887, 1
        %v889 = vmax.f32 %v887, %v888
        %v890 = vsub.f32 %v825, %v840
        %v891 = vsub.f32 %v826, %v847
        %v892 = vsub.f32 %v827, %v854
        %v893 = vsub.f32 %v828, %v861
        %v894 = vsub.f32 %v829, %v868
        %v895 = vsub.f32 %v830, %v875
        %v896 = vsub.f32 %v831, %v882
        %v897 = vsub.f32 %v832, %v889
        %v898 = vmul.f32 %v890, 1.442695
        %v899 = vpow.pop %v898
        %v900 = vmul.f32 %v891, 1.442695
        %v901 = vpow.pop %v900
        %v902 = vmul.f32 %v892, 1.442695
        %v903 = vpow.pop %v902
        %v904 = vmul.f32 %v893, 1.442695
        %v905 = vpow.pop %v904
        %v906 = vmul.f32 %v894, 1.442695
        %v907 = vpow.pop %v906
        %v908 = vmul.f32 %v895, 1.442695
        %v909 = vpow.pop %v908
        %v910 = vmul.f32 %v896, 1.442695
        %v911 = vpow.pop %v910
        %v912 = vmul.f32 %v897, 1.442695
        %v913 = vpow.pop %v912
        %v914 = vsel %vm833, %v899, 0.0
        %v915 = vrot.slane %v914, 4
        %v916 = vadd.f32 %v914, %v915
        %v917 = vrot.slane %v916, 2
        %v918 = vadd.f32 %v916, %v917
        %v919 = vrot.slane %v918, 1
        %v920 = vadd.f32 %v918, %v919
        %v921 = vsel %vm833, %v901, 0.0
        %v922 = vrot.slane %v921, 4
        %v923 = vadd.f32 %v921, %v922
        %v924 = vrot.slane %v923, 2
        %v925 = vadd.f32 %v923, %v924
        %v926 = vrot.slane %v925, 1
        %v927 = vadd.f32 %v925, %v926
        %v928 = vsel %vm833, %v903, 0.0
        %v929 = vrot.slane %v928, 4
        %v930 = vadd.f32 %v928, %v929
        %v931 = vrot.slane %v930, 2
        %v932 = vadd.f32 %v930, %v931
        %v933 = vrot.slane %v932, 1
        %v934 = vadd.f32 %v932, %v933
        %v935 = vsel %vm833, %v905, 0.0
        %v936 = vrot.slane %v935, 4
        %v937 = vadd.f32 %v935, %v936
        %v938 = vrot.slane %v937, 2
        %v939 = vadd.f32 %v937, %v938
        %v940 = vrot.slane %v939, 1
        %v941 = vadd.f32 %v939, %v940
        %v942 = vsel %vm833, %v907, 0.0
        %v943 = vrot.slane %v942, 4
        %v944 = vadd.f32 %v942, %v943
        %v945 = vrot.slane %v944, 2
        %v946 = vadd.f32 %v944, %v945
        %v947 = vrot.slane %v946, 1
        %v948 = vadd.f32 %v946, %v947
        %v949 = vsel %vm833, %v909, 0.0
        %v950 = vrot.slane %v949, 4
        %v951 = vadd.f32 %v949, %v950
        %v952 = vrot.slane %v951, 2
        %v953 = vadd.f32 %v951, %v952
        %v954 = vrot.slane %v953, 1
        %v955 = vadd.f32 %v953, %v954
        %v956 = vsel %vm833, %v911, 0.0
        %v957 = vrot.slane %v956, 4
        %v958 = vadd.f32 %v956, %v957
        %v959 = vrot.slane %v958, 2
        %v960 = vadd.f32 %v958, %v959
        %v961 = vrot.slane %v960, 1
        %v962 = vadd.f32 %v960, %v961
        %v963 = vsel %vm833, %v913, 0.0
        %v964 = vrot.slane %v963, 4
        %v965 = vadd.f32 %v963, %v964
        %v966 = vrot.slane %v965, 2
        %v967 = vadd.f32 %v965, %v966
        %v968 = vrot.slane %v967, 1
        %v969 = vadd.f32 %v967, %v968
        %v970 = vpack.c.bf16 %v901, %v899
        %v971 = vpack.c.bf16 %v905, %v903
        %v972 = vpack.c.bf16 %v909, %v907
        %v973 = vpack.c.bf16 %v913, %v911
        %v975 = vsel %vm833, %v970, 0
        %v978 = vsel %vm833, %v971, 0
        %v981 = vsel %vm833, %v972, 0
        %v984 = vsel %vm833, %v973, 0
        %vm986 = vcmask 1041408
        %v988 = vsel %vm986, %v606, 0
        %990 = vmatprep.subr.bf16.mxu0 0
        %991 = vmatpush1.bf16.msra.mxu0 %v988
        %992 = vmatprep.subr.bf16.mxu0 0
        %993 = vmatpush1.bf16.msra.mxu0 0
        %994 = vmatprep.subr.bf16.mxu0 0
        %995 = vmatpush1.bf16.msra.mxu0 0
        %996 = vmatprep.subr.bf16.mxu0 0
        %997 = vmatpush1.bf16.msra.mxu0 0
        %998 = vmatprep.subr.bf16.mxu0 0
        %999 = vmatpush1.bf16.msra.mxu0 0
        %1000 = vmatprep.subr.bf16.mxu0 0
        %1001 = vmatpush1.bf16.msra.mxu0 0
        %1002 = vmatprep.subr.bf16.mxu0 0
        %1003 = vmatpush1.bf16.msra.mxu0 0
        %1004 = vmatprep.subr.bf16.mxu0 0
        %1005 = vmatpush1.bf16.msra.mxu0 0
        %1006 = vmatprep.subr.bf16.mxu0 0
        %1007 = vmatpush1.bf16.msra.mxu0 0
        %1008 = vmatprep.subr.bf16.mxu0 0
        %1009 = vmatpush1.bf16.msra.mxu0 0
        %1010 = vmatprep.subr.bf16.mxu0 0
        %1011 = vmatpush1.bf16.msra.mxu0 0
        %1012 = vmatprep.subr.bf16.mxu0 0
        %1013 = vmatpush1.bf16.msra.mxu0 0
        %1014 = vmatprep.subr.bf16.mxu0 0
        %1015 = vmatpush1.bf16.msra.mxu0 0
        %1016 = vmatprep.subr.bf16.mxu0 0
        %1017 = vmatpush1.bf16.msra.mxu0 0
        %1018 = vmatprep.subr.bf16.mxu0 0
        %1019 = vmatpush1.bf16.msra.mxu0 0
        %1020 = vmatprep.subr.bf16.mxu0 0
        %1021 = vmatpush1.bf16.msra.mxu0 0
        %1022 = vmatprep.mubr.bf16.mxu0 0
        %1023 = vmatmul.mubr.bf16.gmra.mrb[0].mxu0 %v975
        %v1024 = vpop.f32.mrb[0].mxu0
        %v1025 = vadd.f32 0.0, %v1024
        %v1026 = vpop.f32.mrb[0].mxu0
        %v1027 = vpop.f32.mrb[0].mxu0
        %v1028 = vadd.f32 0.0, %v1027
        %v1029 = vpop.f32.mrb[0].mxu0
        %1030 = vmatprep.mubr.bf16.mxu0 0
        %1031 = vmatmul.mubr.bf16.gmra.mrb[0].mxu0 %v978
        %v1032 = vpop.f32.mrb[0].mxu0
        %v1033 = vadd.f32 0.0, %v1032
        %v1034 = vpop.f32.mrb[0].mxu0
        %v1035 = vpop.f32.mrb[0].mxu0
        %v1036 = vadd.f32 0.0, %v1035
        %v1037 = vpop.f32.mrb[0].mxu0
        %1038 = vmatprep.mubr.bf16.mxu0 0
        %1039 = vmatmul.mubr.bf16.gmra.mrb[0].mxu0 %v981
        %v1040 = vpop.f32.mrb[0].mxu0
        %v1041 = vadd.f32 0.0, %v1040
        %v1042 = vpop.f32.mrb[0].mxu0
        %v1043 = vpop.f32.mrb[0].mxu0
        %v1044 = vadd.f32 0.0, %v1043
        %v1045 = vpop.f32.mrb[0].mxu0
        %1046 = vmatprep.mubr.bf16.mxu0 0
        %1047 = vmatmul.mubr.bf16.gmra.mrb[0].mxu0 %v984
        %v1048 = vpop.f32.mrb[0].mxu0
        %v1049 = vadd.f32 0.0, %v1048
        %v1050 = vpop.f32.mrb[0].mxu0
        %v1051 = vpop.f32.mrb[0].mxu0
        %v1052 = vadd.f32 0.0, %v1051
        %v1053 = vpop.f32.mrb[0].mxu0
        %1054 = vdwg.mxu0
        %1063 = vrot.lane.b32.xlu0 %v572, 96
        %v1064 = vpop.permute.xlu0 %1063
        %1065 = vrot.lane.b32.xlu0 %v575, 96
        %v1066 = vpop.permute.xlu0 %1065
        %1067 = vrot.lane.b32.xlu0 %v580, 96
        %v1068 = vpop.permute.xlu0 %1067
        %1069 = vrot.lane.b32.xlu0 %v583, 96
        %v1070 = vpop.permute.xlu0 %1069
        %1071 = vrot.lane.b32.xlu0 %v588, 96
        %v1072 = vpop.permute.xlu0 %1071
        %1073 = vrot.lane.b32.xlu0 %v591, 96
        %v1074 = vpop.permute.xlu0 %1073
        %1075 = vrot.lane.b32.xlu0 %v596, 96
        %v1076 = vpop.permute.xlu0 %1075
        %1077 = vrot.lane.b32.xlu0 %v599, 96
        %v1078 = vpop.permute.xlu0 %1077
        %v1087 = vmul.f32 %v1025, %v1064
        %v1088 = vmul.f32 %v1028, %v1066
        %v1089 = vmul.f32 %v1033, %v1068
        %v1090 = vmul.f32 %v1036, %v1070
        %v1091 = vmul.f32 %v1041, %v1072
        %v1092 = vmul.f32 %v1044, %v1074
        %v1093 = vmul.f32 %v1049, %v1076
        %v1094 = vmul.f32 %v1052, %v1078
        %v1095 = vsel %vm461, %v1087, 0.0
        %v1096 = vrot.slane %v1095, 4
        %v1097 = vadd.f32 %v1095, %v1096
        %v1098 = vrot.slane %v1097, 2
        %v1099 = vadd.f32 %v1097, %v1098
        %v1100 = vrot.slane %v1099, 1
        %v1101 = vadd.f32 %v1099, %v1100
        %v1102 = vsel %vm461, %v1088, 0.0
        %v1103 = vrot.slane %v1102, 4
        %v1104 = vadd.f32 %v1102, %v1103
        %v1105 = vrot.slane %v1104, 2
        %v1106 = vadd.f32 %v1104, %v1105
        %v1107 = vrot.slane %v1106, 1
        %v1108 = vadd.f32 %v1106, %v1107
        %v1109 = vsel %vm461, %v1089, 0.0
        %v1110 = vrot.slane %v1109, 4
        %v1111 = vadd.f32 %v1109, %v1110
        %v1112 = vrot.slane %v1111, 2
        %v1113 = vadd.f32 %v1111, %v1112
        %v1114 = vrot.slane %v1113, 1
        %v1115 = vadd.f32 %v1113, %v1114
        %v1116 = vsel %vm461, %v1090, 0.0
        %v1117 = vrot.slane %v1116, 4
        %v1118 = vadd.f32 %v1116, %v1117
        %v1119 = vrot.slane %v1118, 2
        %v1120 = vadd.f32 %v1118, %v1119
        %v1121 = vrot.slane %v1120, 1
        %v1122 = vadd.f32 %v1120, %v1121
        %v1123 = vsel %vm461, %v1091, 0.0
        %v1124 = vrot.slane %v1123, 4
        %v1125 = vadd.f32 %v1123, %v1124
        %v1126 = vrot.slane %v1125, 2
        %v1127 = vadd.f32 %v1125, %v1126
        %v1128 = vrot.slane %v1127, 1
        %v1129 = vadd.f32 %v1127, %v1128
        %v1130 = vsel %vm461, %v1092, 0.0
        %v1131 = vrot.slane %v1130, 4
        %v1132 = vadd.f32 %v1130, %v1131
        %v1133 = vrot.slane %v1132, 2
        %v1134 = vadd.f32 %v1132, %v1133
        %v1135 = vrot.slane %v1134, 1
        %v1136 = vadd.f32 %v1134, %v1135
        %v1137 = vsel %vm461, %v1093, 0.0
        %v1138 = vrot.slane %v1137, 4
        %v1139 = vadd.f32 %v1137, %v1138
        %v1140 = vrot.slane %v1139, 2
        %v1141 = vadd.f32 %v1139, %v1140
        %v1142 = vrot.slane %v1141, 1
        %v1143 = vadd.f32 %v1141, %v1142
        %v1144 = vsel %vm461, %v1094, 0.0
        %v1145 = vrot.slane %v1144, 4
        %v1146 = vadd.f32 %v1144, %v1145
        %v1147 = vrot.slane %v1146, 2
        %v1148 = vadd.f32 %v1146, %v1147
        %v1149 = vrot.slane %v1148, 1
        %v1150 = vadd.f32 %v1148, %v1149
        %v1151 = vrcp.pop %v920
        %v1152 = vrcp.pop %v927
        %v1153 = vrcp.pop %v934
        %v1154 = vrcp.pop %v941
        %v1155 = vrcp.pop %v948
        %v1156 = vrcp.pop %v955
        %v1157 = vrcp.pop %v962
        %v1158 = vrcp.pop %v969
        %v1159 = vunpack.c.l.bf16 %v606
        %v1168 = vsel %vm428, %v1152, %v1151
        %v1169 = vsel %vm431, %v1153, %v1168
        %v1170 = vsel %vm434, %v1154, %v1169
        %v1171 = vsel %vm437, %v1155, %v1170
        %v1172 = vsel %vm440, %v1156, %v1171
        %v1173 = vsel %vm443, %v1157, %v1172
        %v1174 = vsel %vm446, %v1158, %v1173
        %v1175 = vsel %vm833, %v1174, 0
        %vm1177 = vcmask 1043456
        %v1179 = vsel %vm1177, %v1159, 0
        %1181 = vmatprep.subr.mxu0 0.0
        %1182 = vmatpush1.msra.mxu0 %v1179
        %1183 = vmatprep.subr.mxu0 0.0
        %1184 = vmatpush1.msra.mxu0 0.0
        %1185 = vmatprep.subr.mxu0 0.0
        %1186 = vmatpush1.msra.mxu0 0.0
        %1187 = vmatprep.subr.mxu0 0.0
        %1188 = vmatpush1.msra.mxu0 0.0
        %1189 = vmatprep.subr.mxu0 0.0
        %1190 = vmatpush1.msra.mxu0 0.0
        %1191 = vmatprep.subr.mxu0 0.0
        %1192 = vmatpush1.msra.mxu0 0.0
        %1193 = vmatprep.subr.mxu0 0.0
        %1194 = vmatpush1.msra.mxu0 0.0
        %1195 = vmatprep.subr.mxu0 0.0
        %1196 = vmatpush1.msra.mxu0 0.0
        %1197 = vmatprep.subr.mxu0 0.0
        %1198 = vmatpush1.msra.mxu0 0.0
        %1199 = vmatprep.subr.mxu0 0.0
        %1200 = vmatpush1.msra.mxu0 0.0
        %1201 = vmatprep.subr.mxu0 0.0
        %1202 = vmatpush1.msra.mxu0 0.0
        %1203 = vmatprep.subr.mxu0 0.0
        %1204 = vmatpush1.msra.mxu0 0.0
        %1205 = vmatprep.subr.mxu0 0.0
        %1206 = vmatpush1.msra.mxu0 0.0
        %1207 = vmatprep.subr.mxu0 0.0
        %1208 = vmatpush1.msra.mxu0 0.0
        %1209 = vmatprep.subr.mxu0 0.0
        %1210 = vmatpush1.msra.mxu0 0.0
        %1211 = vmatprep.subr.mxu0 0.0
        %1212 = vmatpush1.msra.mxu0 0.0
        %1213 = vmatprep.subr.mxu0 0.0
        %1214 = vmatpush1.msra.mxu0 0.0
        %1215 = vmatprep.subr.mxu0 0.0
        %1216 = vmatpush1.msra.mxu0 0.0
        %1217 = vmatprep.subr.mxu0 0.0
        %1218 = vmatpush1.msra.mxu0 0.0
        %1219 = vmatprep.subr.mxu0 0.0
        %1220 = vmatpush1.msra.mxu0 0.0
        %1221 = vmatprep.subr.mxu0 0.0
        %1222 = vmatpush1.msra.mxu0 0.0
        %1223 = vmatprep.subr.mxu0 0.0
        %1224 = vmatpush1.msra.mxu0 0.0
        %1225 = vmatprep.subr.mxu0 0.0
        %1226 = vmatpush1.msra.mxu0 0.0
        %1227 = vmatprep.subr.mxu0 0.0
        %1228 = vmatpush1.msra.mxu0 0.0
        %1229 = vmatprep.subr.mxu0 0.0
        %1230 = vmatpush1.msra.mxu0 0.0
        %1231 = vmatprep.subr.mxu0 0.0
        %1232 = vmatpush1.msra.mxu0 0.0
        %1233 = vmatprep.subr.mxu0 0.0
        %1234 = vmatpush1.msra.mxu0 0.0
        %1235 = vmatprep.subr.mxu0 0.0
        %1236 = vmatpush1.msra.mxu0 0.0
        %1237 = vmatprep.subr.mxu0 0.0
        %1238 = vmatpush1.msra.mxu0 0.0
        %1239 = vmatprep.subr.mxu0 0.0
        %1240 = vmatpush1.msra.mxu0 0.0
        %1241 = vmatprep.subr.mxu0 0.0
        %1242 = vmatpush1.msra.mxu0 0.0
        %1243 = vmatprep.subr.mxu0 0.0
        %1244 = vmatpush1.msra.mxu0 0.0
        %1245 = vmatprep.mubr.f32.mxu0 0.0
        %1246 = vmatmul.mubr.f32.gmra.mrb[0].mxu0 %v1175
        %v1247 = vpop.f32.mrb[0].mxu0
        %v1248 = vadd.f32 0.0, %v1247
        %v1249 = vpop.f32.mrb[0].mxu0
        %1250 = vdwg.mxu0
        %v1252 = vrot.slane %v1248, 1
        %v1253 = vrot.slane %v1248, 2
        %v1254 = vrot.slane %v1248, 3
        %v1255 = vrot.slane %v1248, 4
        %v1256 = vrot.slane %v1248, 5
        %v1257 = vrot.slane %v1248, 6
        %v1258 = vrot.slane %v1248, 7
        %v1267 = vmul.f32 %v1101, %v1248
        %v1268 = vmul.f32 %v1108, %v1252
        %v1269 = vmul.f32 %v1115, %v1253
        %v1270 = vmul.f32 %v1122, %v1254
        %v1271 = vmul.f32 %v1129, %v1255
        %v1272 = vmul.f32 %v1136, %v1256
        %v1273 = vmul.f32 %v1143, %v1257
        %v1274 = vmul.f32 %v1150, %v1258
        %v1275 = vpack.c.bf16 %v1267, %v1267
        %v1276 = vpack.c.bf16 %v1268, %v1268
        %v1277 = vpack.c.bf16 %v1269, %v1269
        %v1278 = vpack.c.bf16 %v1270, %v1270
        %v1279 = vpack.c.bf16 %v1271, %v1271
        %v1280 = vpack.c.bf16 %v1272, %v1272
        %v1281 = vpack.c.bf16 %v1273, %v1273
        %v1282 = vpack.c.bf16 %v1274, %v1274
        %v1283 = vld [vmem:[#allocation8] sm:$0xf]
        %v1284 = vld [vmem:[#allocation8 + $0x4] sm:$0xf]
        %v1285 = vld [vmem:[#allocation8 + $0x8] sm:$0xf]
        %v1286 = vld [vmem:[#allocation8 + $0xc] sm:$0xf]
        %v1287 = vld [vmem:[#allocation10] sm:$0x1]
        %v1289 = vlaneseq
        %v1290 = vshrl.u32 %v1289, 7
        %v1291 = vsub.s32 0, %v1290
        %v1292 = vrot.slane %v1287, %v1291
        %v1302 = vunpack.c.l.b16 %v1275
        %v1303 = vunpack.c.l.b16 %v1276
        %v1304 = vunpack.c.l.b16 %v1277
        %v1305 = vunpack.c.l.b16 %v1278
        %v1306 = vunpack.c.l.b16 %v1279
        %v1307 = vunpack.c.l.b16 %v1280
        %v1308 = vunpack.c.l.b16 %v1281
        %v1309 = vunpack.c.l.b16 %v1282
        %v1310 = vrot.slane %v1303, 7
        %v1311 = vsel %vm428, %v1310, %v1302
        %v1312 = vrot.slane %v1304, 6
        %v1313 = vsel %vm431, %v1312, %v1311
        %v1314 = vrot.slane %v1305, 5
        %v1315 = vsel %vm434, %v1314, %v1313
        %v1316 = vrot.slane %v1306, 4
        %v1317 = vsel %vm437, %v1316, %v1315
        %v1318 = vrot.slane %v1307, 3
        %v1319 = vsel %vm440, %v1318, %v1317
        %v1320 = vrot.slane %v1308, 2
        %v1321 = vsel %vm443, %v1320, %v1319
        %v1322 = vrot.slane %v1309, 1
        %v1323 = vsel %vm446, %v1322, %v1321
        %v1324 = vpack.c.b16 %v1323, %v1323
        %v1329 = vunpack.c.l.b16 %v1283
        %v1330 = vunpack.c.l.b16 %v1284
        %v1331 = vunpack.c.l.b16 %v1285
        %v1332 = vunpack.c.l.b16 %v1286
        %v1333 = vpack.c.b16 %v1330, %v1329
        %v1334 = vpack.c.b16 %v1332, %v1331
        %v1338 = vsel %vm461, %v1324, 0
        %1340 = vmatprep.subr.bf16.mxu0 0
        %1341 = vmatpush1.bf16.msra.mxu0 %v1333
        %1342 = vmatprep.subr.bf16.mxu0 0
        %1343 = vmatpush1.bf16.msra.mxu0 %v1334
        %1344 = vmatprep.subr.bf16.mxu0 0
        %1345 = vmatpush1.bf16.msra.mxu0 0
        %1346 = vmatprep.subr.bf16.mxu0 0
        %1347 = vmatpush1.bf16.msra.mxu0 0
        %1348 = vmatprep.subr.bf16.mxu0 0
        %1349 = vmatpush1.bf16.msra.mxu0 0
        %1350 = vmatprep.subr.bf16.mxu0 0
        %1351 = vmatpush1.bf16.msra.mxu0 0
        %1352 = vmatprep.subr.bf16.mxu0 0
        %1353 = vmatpush1.bf16.msra.mxu0 0
        %1354 = vmatprep.subr.bf16.mxu0 0
        %1355 = vmatpush1.bf16.msra.mxu0 0
        %1356 = vmatprep.subr.bf16.mxu0 0
        %1357 = vmatpush1.bf16.msra.mxu0 0
        %1358 = vmatprep.subr.bf16.mxu0 0
        %1359 = vmatpush1.bf16.msra.mxu0 0
        %1360 = vmatprep.subr.bf16.mxu0 0
        %1361 = vmatpush1.bf16.msra.mxu0 0
        %1362 = vmatprep.subr.bf16.mxu0 0
        %1363 = vmatpush1.bf16.msra.mxu0 0
        %1364 = vmatprep.subr.bf16.mxu0 0
        %1365 = vmatpush1.bf16.msra.mxu0 0
        %1366 = vmatprep.subr.bf16.mxu0 0
        %1367 = vmatpush1.bf16.msra.mxu0 0
        %1368 = vmatprep.subr.bf16.mxu0 0
        %1369 = vmatpush1.bf16.msra.mxu0 0
        %1370 = vmatprep.subr.bf16.mxu0 0
        %1371 = vmatpush1.bf16.msra.mxu0 0
        %1372 = vmatprep.mubr.bf16.mxu0 0
        %1373 = vmatmul.mubr.bf16.gmra.mrb[0].mxu0 %v1338
        %v1374 = vpop.f32.mrb[0].mxu0
        %v1375 = vadd.f32 %v1292, %v1374
        %v1376 = vpop.f32.mrb[0].mxu0
        %v1377 = vpop.f32.mrb[0].mxu0
        %v1378 = vpop.f32.mrb[0].mxu0
        %1379 = vdwg.mxu0
        %v1381 = vcombine.high %v1375, %v1375
        %v1383 = vunpack.c.l.s4 1966171168
        %v1384 = vunpack.c.0.s8 %v1383
        %v1385 = vlaneseq
        %v1386 = vshrl.u32 %v1385, 7
        %v1387 = vsub.s32 %v1384, %v1386
        %v1388 = vrot.slane %v1375, %v1387
        %v1390 = vunpack.c.l.s4 1966171168
        %v1391 = vunpack.c.0.s8 %v1390
        %v1392 = vlaneseq
        %v1393 = vshrl.u32 %v1392, 7
        %v1394 = vsub.s32 %v1391, %v1393
        %v1395 = vrot.slane %v1381, %v1394
        %v1396 = vcombine.high %v1388, %v1388
        %v1397 = vcombine.high %v1395, %v1395
        %v1399 = vunpack.c.l.s4 1966171168
        %v1400 = vunpack.c.0.s8 %v1399
        %v1401 = vlaneseq
        %v1402 = vshrl.u32 %v1401, 7
        %v1403 = vsub.s32 %v1400, %v1402
        %v1404 = vrot.slane %v1388, %v1403
        %v1406 = vunpack.c.l.s4 1966171168
        %v1407 = vunpack.c.0.s8 %v1406
        %v1408 = vlaneseq
        %v1409 = vshrl.u32 %v1408, 7
        %v1410 = vsub.s32 %v1407, %v1409
        %v1411 = vrot.slane %v1395, %v1410
        %v1413 = vunpack.c.l.s4 1966171168
        %v1414 = vunpack.c.0.s8 %v1413
        %v1415 = vlaneseq
        %v1416 = vshrl.u32 %v1415, 7
        %v1417 = vsub.s32 %v1414, %v1416
        %v1418 = vrot.slane %v1396, %v1417
        %v1420 = vunpack.c.l.s4 1966171168
        %v1421 = vunpack.c.0.s8 %v1420
        %v1422 = vlaneseq
        %v1423 = vshrl.u32 %v1422, 7
        %v1424 = vsub.s32 %v1421, %v1423
        %v1425 = vrot.slane %v1397, %v1424
        %v1426 = vcombine.high %v1404, %v1404
        %v1427 = vcombine.high %v1411, %v1411
        %v1428 = vcombine.high %v1418, %v1418
        %v1429 = vcombine.high %v1425, %v1425
        %vm1438 = vcmask 253952
        %1439 = vst.msk [vmem:[%s379] sm:$0x1] %vm1438, %v1404
        %1440 = vst.msk [vmem:[%s379 + $0x1] sm:$0x1] %vm1438, %v1418
        %1441 = vst.msk [vmem:[%s379 + $0x2] sm:$0x1] %vm1438, %v1426
        %1442 = vst.msk [vmem:[%s379 + $0x3] sm:$0x1] %vm1438, %v1428
        %1443 = vst.msk [vmem:[%s379 + $0x4] sm:$0x1] %vm1438, %v1411
        %1444 = vst.msk [vmem:[%s379 + $0x5] sm:$0x1] %vm1438, %v1425
        %1445 = vst.msk [vmem:[%s379 + $0x6] sm:$0x1] %vm1438, %v1427
        %1446 = vst.msk [vmem:[%s379 + $0x7] sm:$0x1] %vm1438, %v1429
        %s1447 = sand.u32 %s187, 1
        %s1448 = scalar_lea.sflag [#allocation4], %s1447
        %s1449 = sand.u32 %s187, 1
        %s1450 = smul.addr %s1449, 8
        %s1451 = scalar_lea.vmem [#allocation14], %s1450
        // Predicated region
        $region77: #{tpu_custom_call.1} parent=47 // pred_check
          %p1452 = pneg %p197
        $region78: #{tpu_custom_call.1} parent=47 // pred_check_branch
          %1454 = sbr.rel (%p1452) target = $region80
        $region79: #{tpu_custom_call.1} parent=47 // pred_region
          %s1455 = smul.u32 8, %s27
          %s1457 = ssub.s32 128, 128
          %1458 = vsyncadd %s1448, %s1457
          %s1459 = smul.addr %s1455, 16
          %s1460 = scalar_lea.hbm %s7, %s1459
          %s1461 = sshll.u32 %s1451, 4
          %s1462 = int_to_ptr.vmem [resolvable:$true] %s1461
          %1467 = dma.vmem_to_hbm [thread:$0]  %s1462, 128, %s1460, %s1448, 16, 16, 1
        $region80: #{tpu_custom_call.1} parent=47 // pred_fallthru
          _
      $region48: #{tpu_custom_call.1} parent=5 // pred_fallthru
        _
      %p1468 = scmp.le.s32.totalorder 2, %s22
      // Predicated region
      $region81: #{tpu_custom_call.1} parent=5 // pred_check
        %p1469 = pneg %p1468
      $region82: #{tpu_custom_call.1} parent=5 // pred_check_branch
        %1471 = sbr.rel (%p1469) target = $region84
      $region83: #{tpu_custom_call.1} parent=5 // pred_region
        %s1472 = ssub.s32 %s22, 2
        // Predicated region
        $region85: #{tpu_custom_call.1} parent=83 // pred_check
          %p1473 = pneg %p203
        $region86: #{tpu_custom_call.1} parent=83 // pred_check_branch
          %1475 = sbr.rel (%p1473) target = $region88
        $region87: #{tpu_custom_call.1} parent=83 // pred_region
          %s1476 = sand.u32 %s188, 1
          %s1477 = scalar_lea.sflag [#allocation4], %s1476
          %s1478 = sand.u32 %s188, 1
          %s1479 = smul.addr %s1478, 8
          %s1480 = scalar_lea.vmem [#allocation14], %s1479
          %1481 = dma.done %s1477, 128
        $region88: #{tpu_custom_call.1} parent=83 // pred_fallthru
          _
      $region84: #{tpu_custom_call.1} parent=5 // pred_fallthru
        _
    $region6: #{tpu_custom_call.1} parent=1 // loop_footer
      %s26 = sadd.s32 1, %s22
    $region7: #{tpu_custom_call.1} parent=1 // loop_footer_branch
      %21 = sbr.rel target = $region3
    $region8: #{tpu_custom_call.1} parent=1 // loop_exit
      _
    %1482 = vsyncpa [#allocation3], 1
    %s1483 = scalar_lea.sflag [#allocation3], 1
    %1484 = vsyncpa %s1483, 1
    %1485 = vsyncpa [#allocation6], 1
    %1486 = vsyncpa [#allocation9], 1
    %1487 = vsyncpa [#allocation12], 1
    %1488 = vsyncpa [#allocation4], 1
    %s1489 = scalar_lea.sflag [#allocation4], 1
    %1490 = vsyncpa %s1489, 1

</llo_original>
